<compile_context>
chip_gen: v5e
topology: v5e:2x2
jax: 0.10.0
libtpu: 0.0.40
codegen_flags: <defaults>
</compile_context>

<pallas_src>
import jax
import jax.numpy as jnp
import numpy as np
from jax.experimental import pallas as pl
from jax.experimental.pallas import tpu as pltpu

K = 4        # kernel_size
STRIDE = 2   # stride
PAD = 1      # padding
EPS = 1e-5   # BatchNorm2d eps


def _vmem_limit_bytes():
    """Generation-aware Mosaic VMEM limit (leave headroom below physical)."""
    try:
        phys = int(pltpu.get_tpu_info().vmem_capacity_bytes)
    except Exception:
        phys = 64 * 1024 * 1024          # conservative fallback (v7x physical)
    # v7x (64 MiB phys) -> ~36 MiB; v5e/v6e (128 MiB phys) -> ~100 MiB.
    return int(min(max(phys - 28 * 1024 * 1024, int(phys * 0.55)),
                   100 * 1024 * 1024))


def _pick_row_tile(H, per_row_bytes, budget_bytes):
    """Largest divisor of H whose TH-dependent VMEM footprint fits the budget."""
    cap = max(1, budget_bytes // max(per_row_bytes, 1))
    best = 1
    for d in range(1, H + 1):
        if H % d == 0 and d <= cap:
            best = d
    return best


def _fold_weights(w_pt, Cin, Cout):
    """PyTorch ConvTranspose2d weight (Cin, Cout, 4, 4) -> polyphase taps.

    Returns (2, 6, Cin, 2*Cout): for row-phase ph and tap index tr*3+tc, the
    (Cin, 2*Cout) matrix that maps the input slab shifted by (ph+tr, tc) in
    the 1-padded input to the two column-phase output groups (pw = 0, 1).
    Taps whose kw falls outside [0, 4) are structurally zero.
    """
    w = w_pt.astype(jnp.float32)
    wf = jnp.zeros((2, 6, Cin, 2 * Cout), jnp.float32)
    for ph in range(2):
        for tr in range(2):
            kh = 3 - ph - 2 * tr
            for tc in range(3):
                for pw in range(2):
                    kw = 3 + pw - 2 * tc
                    if 0 <= kw <= 3:
                        wf = wf.at[ph, tr * 3 + tc, :,
                                   pw * Cout:(pw + 1) * Cout].set(w[:, :, kh, kw])
    return wf


def build_deconv_forward(x_nchw, w_pt, bias, gamma, beta,
                         *, batch_norm=True, dropout=False,
                         compute_dtype=jnp.bfloat16):
    """x_nchw: (N, Cin, H, W); w_pt: (Cin, Cout, 4, 4) PyTorch ConvTranspose2d."""
    # TODO(synk): Dropout2d path not implemented (module default dropout=False).
    N, Cin, H, W = x_nchw.shape
    Cout = w_pt.shape[1]
    Hout, Wout = H * STRIDE, W * STRIDE

    # ------------------------- VMEM-aware tiling ---------------------------
    vmem_limit = _vmem_limit_bytes()
    in_bytes = 2 * (H + 2) * (W + 2) * Cin * 2          # padded image, bf16, x2 buffers
    w_bytes = 2 * 6 * Cin * 2 * Cout * 2                # folded weights, bf16
    single_buf_w = (2 * w_bytes > vmem_limit // 8)      # only bother when weights are big
    fixed = in_bytes + (1 if single_buf_w else 2) * w_bytes + 64 * 1024
    # TH-dependent bytes per input row:
    #   y out block (bf16, x2 buffers): 16*W*Cout ;  f32 acc + bf16 cast: 12*W*Cout
    #   im2col slab(s) + patch relayout copies + input window: ~44*W*Cin
    per_row = W * (28 * Cout + 44 * Cin)
    budget = max(per_row, int(0.70 * vmem_limit) - fixed)
    TH = _pick_row_tile(H, per_row, budget)
    T = H // TH
    if N * T < 2 and TH > 1:
        # v7x has 2 TensorCores: give the (fully "parallel") grid >= 2 steps.
        TH = max(d for d in range(1, TH) if H % d == 0)
        T = H // TH

    # --- wrapper glue (one fused XLA pass): NHWC, ReLU once, 1-pad, bf16 ----
    x = jnp.transpose(x_nchw, (0, 2, 3, 1)).astype(jnp.float32)
    x = jnp.maximum(x, 0.0)                                     # ReLU once
    xpad = jnp.pad(x, ((0, 0), (1, 1), (1, 1), (0, 0))).astype(compute_dtype)

    # Folded weights as one (6*Cin, 2*Cout) matrix per row-phase (im2col order).
    wf = _fold_weights(w_pt, Cin, Cout).reshape(2, 6 * Cin, 2 * Cout)
    wf = wf.astype(compute_dtype)
    # TODO(synk): v7x fp8 MXU operands (weights/activations) left out; gate on accuracy.

    # ------------------------------ kernel ---------------------------------
    def deconv_kernel(x_ref, w_ref, y_ref, st_ref):
        # x_ref: whole 1-padded image (H+2, W+2, Cin) — auto-pipelined per n.
        t = pl.program_id(1)
        row0 = pl.multiple_of(t * TH, TH)
        xw = x_ref[pl.ds(row0, TH + 2)]          # (TH+2, W+2, Cin) row window + halo

        tot = jnp.zeros((2 * Cout,), jnp.float32)
        tot2 = jnp.zeros((2 * Cout,), jnp.float32)
        for ph in range(2):                      # output row phase
            # im2col: 6 taps (2 row shifts x 3 col shifts) -> one long-K matmul.
            im2col = jnp.concatenate(
                [xw[ph + tr: ph + tr + TH, tc: tc + W, :]
                 for tr in range(2) for tc in range(3)],
                axis=-1).reshape(TH * W, 6 * Cin)
            acc = jnp.dot(im2col, w_ref[ph],
                          preferred_element_type=jnp.float32)   # (TH*W, 2*Cout) f32
            # (r, c, pw, co) ordering -> depth-to-space later is a free reshape.
            y_ref[:, ph] = acc.reshape(TH, W, 2 * Cout).astype(y_ref.dtype)
            tot = tot + jnp.sum(acc, axis=0)
            tot2 = tot2 + jnp.sum(acc * acc, axis=0)
        st_ref[0:1, :] = tot[None, :]
        st_ref[1:2, :] = tot2[None, :]

    wspec_kwargs = ({"pipeline_mode": pl.Buffered(1)} if single_buf_w else {})

    y, stats = pl.pallas_call(
        deconv_kernel,
        out_shape=(
            # bf16 deconv output (BN stats stay f32): halves HBM writeback/read.
            jax.ShapeDtypeStruct((N, H, 2, W, 2 * Cout), compute_dtype),
            jax.ShapeDtypeStruct((N, T, 2, 2 * Cout), jnp.float32),
        ),
        grid_spec=pltpu.PrefetchScalarGridSpec(
            num_scalar_prefetch=0,
            grid=(N, T),
            in_specs=[
                # Whole padded image per n: block index depends only on n, so
                # it is DMA'd once per image and double-buffered across images
                # (halo DMA hidden behind compute).
                pl.BlockSpec((None, H + 2, W + 2, Cin), lambda n, t: (n, 0, 0, 0)),
                # Constant folded weights; single-buffered when large (v7x).
                pl.BlockSpec((2, 6 * Cin, 2 * Cout), lambda n, t: (0, 0, 0),
                             **wspec_kwargs),
            ],
            out_specs=(
                pl.BlockSpec((None, TH, 2, W, 2 * Cout),
                             lambda n, t: (n, t, 0, 0, 0)),
                pl.BlockSpec((None, None, 2, 2 * Cout),
                             lambda n, t: (n, t, 0, 0)),
            ),
        ),
        compiler_params=pltpu.CompilerParams(
            dimension_semantics=("parallel", "parallel"),
            vmem_limit_bytes=vmem_limit,
        ),
    )(xpad, wf)

    # ---------------- epilogue: BN affine fused into the layout pass -------
    # y layout: (n, r, ph, c, pw*Cout+co)  ->  NHWC is a pure reshape.
    y6 = y.reshape(N, H, 2, W, 2, Cout)
    if batch_norm:
        cnt = N * Hout * Wout
        ssum = jnp.sum(stats[:, :, 0, :], axis=(0, 1)).reshape(2, Cout).sum(axis=0)
        ssq = jnp.sum(stats[:, :, 1, :], axis=(0, 1)).reshape(2, Cout).sum(axis=0)
        mean = ssum / cnt
        # NOTE: E[x^2]-mean^2 in f32 can cancel for |mean| >> std at very large
        # N*H*W; a shifted-sum / two-pass scheme is the production-robust variant.
        var = jnp.maximum(ssq / cnt - mean * mean, 0.0)   # biased var (training BN)
        scale = gamma.astype(jnp.float32) * jax.lax.rsqrt(var + EPS)
        shift = beta.astype(jnp.float32) - mean * scale
        out_nhwc = y6.astype(jnp.float32) * scale + shift  # ConvT bias cancelled by BN
    else:
        out_nhwc = y6.astype(jnp.float32) + bias.astype(jnp.float32)
    out_nhwc = out_nhwc.reshape(N, Hout, Wout, Cout)       # free (contiguous) reshape
    return jnp.transpose(out_nhwc, (0, 3, 1, 2))           # single fused pass -> NCHW


def _reference(x_nchw, w_pt, bias, gamma, beta):
    """Pure-JAX f32 reference (ConvTranspose2d via dilated conv + training BN)."""
    xr = jnp.maximum(x_nchw.astype(jnp.float32), 0.0)
    rhs = jnp.transpose(jnp.flip(w_pt, axis=(2, 3)), (1, 0, 2, 3))  # OIHW
    y = jax.lax.conv_general_dilated(
        xr, rhs.astype(jnp.float32),
        window_strides=(1, 1),
        padding=[(K - 1 - PAD,) * 2] * 2,
        lhs_dilation=(STRIDE, STRIDE),
        dimension_numbers=('NCHW', 'OIHW', 'NCHW'),
        precision=jax.lax.Precision.HIGHEST)
    y = y + bias.reshape(1, -1, 1, 1)
    mean = jnp.mean(y, axis=(0, 2, 3), keepdims=True)
    var = jnp.mean((y - mean) ** 2, axis=(0, 2, 3), keepdims=True)
    return ((y - mean) / jnp.sqrt(var + EPS)) * gamma.reshape(1, -1, 1, 1) \
        + beta.reshape(1, -1, 1, 1)


if __name__ == "__main__":
    key = jax.random.PRNGKey(0)
    k1, k2, k3, k4, k5 = jax.random.split(key, 5)

    N, Cin, H, W = 2, 4, 16, 16
    Cout = 8

    x = jax.random.normal(k1, (N, Cin, H, W), jnp.float32)
    w_pt = jax.random.normal(k2, (Cin, Cout, K, K), jnp.float32) / np.sqrt(Cin * K * K)
    bias = 0.1 * jax.random.normal(k3, (Cout,), jnp.float32)
    gamma = 1.0 + 0.1 * jax.random.normal(k4, (Cout,), jnp.float32)
    beta = 0.1 * jax.random.normal(k5, (Cout,), jnp.float32)

    out = jax.jit(build_deconv_forward)(x, w_pt, bias, gamma, beta)
    out = jax.block_until_ready(out)

    assert out.shape == (N, Cout, H * STRIDE, W * STRIDE), out.shape

    ref = _reference(x, w_pt, bias, gamma, beta)
    # Tolerance sized for bf16 MXU operands / bf16 y storage with f32 stats
    # versus the f32 reference.
    np.testing.assert_allclose(np.asarray(out), np.asarray(ref),
                               atol=3e-2, rtol=3e-2)
    print("KERNEL_OK")
</pallas_src>

<mosaic_0001>
module attributes {stable_mosaic.version = 11 : i64} {
  func.func @deconv_kernel(%arg0: i32, %arg1: i32, %arg2: memref<1x18x18x4xbf16, #tpu.memory_space<vmem>>, %arg3: memref<2x24x16xbf16, #tpu.memory_space<vmem>>, %arg4: memref<1x16x2x16x16xbf16, #tpu.memory_space<vmem>>, %arg5: memref<1x1x2x16xf32, #tpu.memory_space<vmem>>) attributes {dimension_semantics = [#tpu.dimension_semantics<parallel>, #tpu.dimension_semantics<parallel>], iteration_bounds = array<i64: 2, 1>, scalar_prefetch = 0 : i64, scratch_operands = 0 : i64, tpu.core_type = #tpu.core_type<tc>, window_params = [{transform_indices = @transform_0, window_bounds = array<i64: 1, 18, 18, 4>}, {pipeline_mode = #tpu.pipeline_mode<synchronous>, transform_indices = @transform_1, window_bounds = array<i64: 2, 24, 16>}, {transform_indices = @transform_2, window_bounds = array<i64: 1, 16, 2, 16, 16>}, {transform_indices = @transform_3, window_bounds = array<i64: 1, 1, 2, 16>}]} {
    %c16_i32 = arith.constant 16 : i32
    %0 = arith.muli %arg1, %c16_i32 : i32
    %1 = tpu.assume_multiple %0, 16 : i32
    %c0 = arith.constant 0 : index
    %2 = arith.index_cast %1 : i32 to index
    %c0_0 = arith.constant 0 : index
    %c0_1 = arith.constant 0 : index
    %3 = vector.load %arg2[%c0, %2, %c0_0, %c0_1] : memref<1x18x18x4xbf16, #tpu.memory_space<vmem>>, vector<1x18x18x4xbf16>
    %4 = vector.shape_cast %3 : vector<1x18x18x4xbf16> to vector<18x18x4xbf16>
    %cst = arith.constant 0.000000e+00 : f32
    %5 = vector.broadcast %cst : f32 to vector<16xf32>
    %cst_2 = arith.constant 0.000000e+00 : f32
    %6 = vector.broadcast %cst_2 : f32 to vector<16xf32>
    %7 = vector.extract_strided_slice %4 {offsets = [0, 0, 0], sizes = [16, 16, 4], strides = [1, 1, 1]} : vector<18x18x4xbf16> to vector<16x16x4xbf16>
    %8 = vector.extract_strided_slice %4 {offsets = [0, 1, 0], sizes = [16, 16, 4], strides = [1, 1, 1]} : vector<18x18x4xbf16> to vector<16x16x4xbf16>
    %9 = vector.extract_strided_slice %4 {offsets = [0, 2, 0], sizes = [16, 16, 4], strides = [1, 1, 1]} : vector<18x18x4xbf16> to vector<16x16x4xbf16>
    %10 = vector.extract_strided_slice %4 {offsets = [1, 0, 0], sizes = [16, 16, 4], strides = [1, 1, 1]} : vector<18x18x4xbf16> to vector<16x16x4xbf16>
    %11 = vector.extract_strided_slice %4 {offsets = [1, 1, 0], sizes = [16, 16, 4], strides = [1, 1, 1]} : vector<18x18x4xbf16> to vector<16x16x4xbf16>
    %12 = vector.extract_strided_slice %4 {offsets = [1, 2, 0], sizes = [16, 16, 4], strides = [1, 1, 1]} : vector<18x18x4xbf16> to vector<16x16x4xbf16>
    %13 = tpu.concatenate %7, %8, %9, %10, %11, %12 in 2 : vector<16x16x4xbf16>, vector<16x16x4xbf16>, vector<16x16x4xbf16>, vector<16x16x4xbf16>, vector<16x16x4xbf16>, vector<16x16x4xbf16> -> vector<16x16x24xbf16>
    %14 = vector.shape_cast %13 : vector<16x16x24xbf16> to vector<256x24xbf16>
    %c0_3 = arith.constant 0 : index
    %c0_4 = arith.constant 0 : index
    %c0_5 = arith.constant 0 : index
    %15 = vector.load %arg3[%c0_3, %c0_4, %c0_5] : memref<2x24x16xbf16, #tpu.memory_space<vmem>>, vector<1x24x16xbf16>
    %16 = vector.shape_cast %15 : vector<1x24x16xbf16> to vector<24x16xbf16>
    %cst_6 = arith.constant dense<0.000000e+00> : vector<256x16xf32>
    %17 = tpu.matmul %14, %16, %cst_6 {dimension_numbers = #tpu.dot_dimension_numbers<[1], [0], [0], [1], [0, 0, 1, 1], [], []>} : vector<256x24xbf16>, vector<24x16xbf16>, vector<256x16xf32> -> vector<256x16xf32>
    %18 = vector.shape_cast %17 : vector<256x16xf32> to vector<16x16x16xf32>
    %19 = arith.truncf %18 : vector<16x16x16xf32> to vector<16x16x16xbf16>
    %c0_7 = arith.constant 0 : index
    %c0_8 = arith.constant 0 : index
    %c0_9 = arith.constant 0 : index
    %c0_10 = arith.constant 0 : index
    %c0_11 = arith.constant 0 : index
    %20 = vector.load %arg4[%c0_7, %c0_8, %c0_9, %c0_10, %c0_11] : memref<1x16x2x16x16xbf16, #tpu.memory_space<vmem>>, vector<1x16x1x16x16xbf16>
    %21 = vector.shape_cast %20 : vector<1x16x1x16x16xbf16> to vector<16x16x16xbf16>
    %22 = vector.shape_cast %19 : vector<16x16x16xbf16> to vector<1x16x1x16x16xbf16>
    tpu.vector_store %arg4[%c0_7, %c0_8, %c0_9, %c0_10, %c0_11], %22 {strides = array<i32>} : memref<1x16x2x16x16xbf16, #tpu.memory_space<vmem>>, vector<1x16x1x16x16xbf16>,
    %cst_12 = arith.constant dense<0.000000e+00> : vector<16xf32>
    %23 = vector.multi_reduction <add>, %17, %cst_12 [0] : vector<256x16xf32> to vector<16xf32>
    %24 = arith.addf %5, %23 : vector<16xf32>
    %25 = arith.mulf %17, %17 : vector<256x16xf32>
    %cst_13 = arith.constant dense<0.000000e+00> : vector<16xf32>
    %26 = vector.multi_reduction <add>, %25, %cst_13 [0] : vector<256x16xf32> to vector<16xf32>
    %27 = arith.addf %6, %26 : vector<16xf32>
    %28 = vector.extract_strided_slice %4 {offsets = [1, 0, 0], sizes = [16, 16, 4], strides = [1, 1, 1]} : vector<18x18x4xbf16> to vector<16x16x4xbf16>
    %29 = vector.extract_strided_slice %4 {offsets = [1, 1, 0], sizes = [16, 16, 4], strides = [1, 1, 1]} : vector<18x18x4xbf16> to vector<16x16x4xbf16>
    %30 = vector.extract_strided_slice %4 {offsets = [1, 2, 0], sizes = [16, 16, 4], strides = [1, 1, 1]} : vector<18x18x4xbf16> to vector<16x16x4xbf16>
    %31 = vector.extract_strided_slice %4 {offsets = [2, 0, 0], sizes = [16, 16, 4], strides = [1, 1, 1]} : vector<18x18x4xbf16> to vector<16x16x4xbf16>
    %32 = vector.extract_strided_slice %4 {offsets = [2, 1, 0], sizes = [16, 16, 4], strides = [1, 1, 1]} : vector<18x18x4xbf16> to vector<16x16x4xbf16>
    %33 = vector.extract_strided_slice %4 {offsets = [2, 2, 0], sizes = [16, 16, 4], strides = [1, 1, 1]} : vector<18x18x4xbf16> to vector<16x16x4xbf16>
    %34 = tpu.concatenate %28, %29, %30, %31, %32, %33 in 2 : vector<16x16x4xbf16>, vector<16x16x4xbf16>, vector<16x16x4xbf16>, vector<16x16x4xbf16>, vector<16x16x4xbf16>, vector<16x16x4xbf16> -> vector<16x16x24xbf16>
    %35 = vector.shape_cast %34 : vector<16x16x24xbf16> to vector<256x24xbf16>
    %c1 = arith.constant 1 : index
    %c0_14 = arith.constant 0 : index
    %c0_15 = arith.constant 0 : index
    %36 = vector.load %arg3[%c1, %c0_14, %c0_15] : memref<2x24x16xbf16, #tpu.memory_space<vmem>>, vector<1x24x16xbf16>
    %37 = vector.shape_cast %36 : vector<1x24x16xbf16> to vector<24x16xbf16>
    %cst_16 = arith.constant dense<0.000000e+00> : vector<256x16xf32>
    %38 = tpu.matmul %35, %37, %cst_16 {dimension_numbers = #tpu.dot_dimension_numbers<[1], [0], [0], [1], [0, 0, 1, 1], [], []>} : vector<256x24xbf16>, vector<24x16xbf16>, vector<256x16xf32> -> vector<256x16xf32>
    %39 = vector.shape_cast %38 : vector<256x16xf32> to vector<16x16x16xf32>
    %40 = arith.truncf %39 : vector<16x16x16xf32> to vector<16x16x16xbf16>
    %c0_17 = arith.constant 0 : index
    %c0_18 = arith.constant 0 : index
    %c1_19 = arith.constant 1 : index
    %c0_20 = arith.constant 0 : index
    %c0_21 = arith.constant 0 : index
    %41 = vector.load %arg4[%c0_17, %c0_18, %c1_19, %c0_20, %c0_21] : memref<1x16x2x16x16xbf16, #tpu.memory_space<vmem>>, vector<1x16x1x16x16xbf16>
    %42 = vector.shape_cast %41 : vector<1x16x1x16x16xbf16> to vector<16x16x16xbf16>
    %43 = vector.shape_cast %40 : vector<16x16x16xbf16> to vector<1x16x1x16x16xbf16>
    tpu.vector_store %arg4[%c0_17, %c0_18, %c1_19, %c0_20, %c0_21], %43 {strides = array<i32>} : memref<1x16x2x16x16xbf16, #tpu.memory_space<vmem>>, vector<1x16x1x16x16xbf16>,
    %cst_22 = arith.constant dense<0.000000e+00> : vector<16xf32>
    %44 = vector.multi_reduction <add>, %38, %cst_22 [0] : vector<256x16xf32> to vector<16xf32>
    %45 = arith.addf %24, %44 : vector<16xf32>
    %46 = arith.mulf %38, %38 : vector<256x16xf32>
    %cst_23 = arith.constant dense<0.000000e+00> : vector<16xf32>
    %47 = vector.multi_reduction <add>, %46, %cst_23 [0] : vector<256x16xf32> to vector<16xf32>
    %48 = arith.addf %27, %47 : vector<16xf32>
    %49 = vector.shape_cast %45 : vector<16xf32> to vector<1x16xf32>
    %c0_24 = arith.constant 0 : index
    %c0_25 = arith.constant 0 : index
    %c0_26 = arith.constant 0 : index
    %c0_27 = arith.constant 0 : index
    %50 = vector.load %arg5[%c0_24, %c0_25, %c0_26, %c0_27] : memref<1x1x2x16xf32, #tpu.memory_space<vmem>>, vector<1x1x1x16xf32>
    %51 = vector.shape_cast %50 : vector<1x1x1x16xf32> to vector<1x16xf32>
    %52 = vector.shape_cast %49 : vector<1x16xf32> to vector<1x1x1x16xf32>
    tpu.vector_store %arg5[%c0_24, %c0_25, %c0_26, %c0_27], %52 {strides = array<i32>} : memref<1x1x2x16xf32, #tpu.memory_space<vmem>>, vector<1x1x1x16xf32>,
    %53 = vector.shape_cast %48 : vector<16xf32> to vector<1x16xf32>
    %c0_28 = arith.constant 0 : index
    %c0_29 = arith.constant 0 : index
    %c1_30 = arith.constant 1 : index
    %c0_31 = arith.constant 0 : index
    %54 = vector.load %arg5[%c0_28, %c0_29, %c1_30, %c0_31] : memref<1x1x2x16xf32, #tpu.memory_space<vmem>>, vector<1x1x1x16xf32>
    %55 = vector.shape_cast %54 : vector<1x1x1x16xf32> to vector<1x16xf32>
    %56 = vector.shape_cast %53 : vector<1x16xf32> to vector<1x1x1x16xf32>
    tpu.vector_store %arg5[%c0_28, %c0_29, %c1_30, %c0_31], %56 {strides = array<i32>} : memref<1x1x2x16xf32, #tpu.memory_space<vmem>>, vector<1x1x1x16xf32>,
    return
  }
  func.func @transform_0(%arg0: i32, %arg1: i32) -> (i32, i32, i32, i32) {
    %c0_i32 = arith.constant 0 : i32
    %c0_i32_0 = arith.constant 0 : i32
    %c0_i32_1 = arith.constant 0 : i32
    %c0_i32_2 = arith.constant 0 : i32
    return %arg0, %c0_i32, %c0_i32_0, %c0_i32_1 : i32, i32, i32, i32
  }
  func.func @transform_1(%arg0: i32, %arg1: i32) -> (i32, i32, i32) {
    %c0_i32 = arith.constant 0 : i32
    %c0_i32_0 = arith.constant 0 : i32
    %c0_i32_1 = arith.constant 0 : i32
    %c0_i32_2 = arith.constant 0 : i32
    return %c0_i32, %c0_i32_0, %c0_i32_1 : i32, i32, i32
  }
  func.func @transform_2(%arg0: i32, %arg1: i32) -> (i32, i32, i32, i32, i32) {
    %c0_i32 = arith.constant 0 : i32
    %c0_i32_0 = arith.constant 0 : i32
    %c0_i32_1 = arith.constant 0 : i32
    %c0_i32_2 = arith.constant 0 : i32
    return %arg0, %arg1, %c0_i32, %c0_i32_0, %c0_i32_1 : i32, i32, i32, i32, i32
  }
  func.func @transform_3(%arg0: i32, %arg1: i32) -> (i32, i32, i32, i32) {
    %c0_i32 = arith.constant 0 : i32
    %c0_i32_0 = arith.constant 0 : i32
    %c0_i32_1 = arith.constant 0 : i32
    return %arg0, %arg1, %c0_i32, %c0_i32_0 : i32, i32, i32, i32
  }
}

</mosaic_0001>

<llo_original>
// kernel: build_deconv_forward.1
$region0: #{build_deconv_forward.1}
  #allocation0 [shape = 'u32[]', space=smem, size = 0x4, offset = 0x4, fixed_abs, tag = 'smem constant byte address 0x4 - core index']
  #allocation1 [shape = 'u32[72,128]{1,0:T(1,128)}', space=vmem, size = 0x9000, scoped, tag = 'internal scratch']
  %s0 = inlined_call_operand.vmem [shape: bf16[2,18,18,4], index: 0, kind: input, shape index: {}]
  %s1 = inlined_call_operand.vmem [shape: bf16[2,24,16], index: 1, kind: input, shape index: {}]
  %s2 = inlined_call_operand.vmem [shape: bf16[2,16,2,16,16], index: 2, kind: output, shape index: {0}]
  %s3 = inlined_call_operand.vmem [shape: f32[2,1,2,16], index: 3, kind: output, shape index: {1}]
  %4 = xla_tuple %s2, %s3
  %s5 = sld [smem:[#allocation0]]
  $region49: #{build_deconv_forward.1} parent=0
    _
  %s7 = ssub.s32 1, %s5
  %s8 = scalar_select 0, %s7, %s5
  loop: start=0, step=1, limit=4
  $region2: #{build_deconv_forward.1} parent=0 // loop_pre_header
    _
  $region3: #{build_deconv_forward.1} parent=0 // loop_header
    %s10 = sphi 0, %s14
    %p11 = scmp.ge.s32.totalorder %s10, 4
    %s17 = sphi 0, %s29
    %s18 = sphi 0, %s25
    %s19 = sphi 0, %s17
    %s20 = sphi 0, %s18
    %s21 = sphi 0, %s19
    %s22 = sphi 0, %s20
    %s32 = sphi 0, %s34
    %s35 = sphi 0, %s32
    %s36 = sphi 0, %s35
    %s52 = sphi 0, %s36
    %s56 = sphi 0, %s56
    %s58 = sphi 0, %s56
    %s59 = sphi 0, %s58
    %s73 = sphi 0, %s59
    %s81 = sphi 0, %s83
    %s84 = sphi 0, %s81
    %s85 = sphi 0, %s84
    %s101 = sphi 0, %s85
    %s109 = sphi 0, %s111
    %s112 = sphi 0, %s109
    %s113 = sphi 0, %s112
    %s129 = sphi 0, %s113
  $region4: #{build_deconv_forward.1} parent=0 // loop_header_branch
    %13 = sbr.rel (%p11) target = $region8
  $region5: #{build_deconv_forward.1} parent=0 // loop_body
    %s15 = ssub.s32 %s10, 1
    %s16 = ssub.s32 %s10, 2
    %s23 = sadd.s32 1, %s18
    %p24 = scmp.ge.s32.totalorder %s23, 1
    %s25 = scalar_select %p24, 0, %s23
    %s26 = sadd.s32 1, %s17
    %s27 = scalar_select %p24, %s26, %s17
    %p28 = scmp.ge.s32.totalorder %s27, 2
    %s29 = scalar_select %p28, 0, %s27
    %s30 = ssub.s32 %s17, %s29
    %p31 = scmp.eq.s32.totalorder %s30, 0
    %s33 = sadd.s32 %s32, 1
    %s34 = scalar_select %p31, %s32, %s33
    %p37 = pneg %p31
    %p38 = scmp.eq.s32.totalorder %s10, 1
    %p39 = por %p37, %p38
    %p40 = scmp.ne.s32.totalorder %s32, %s35
    %p41 = scmp.eq.s32.totalorder %s10, 0
    %p42 = por %p40, %p41
    %p43 = scmp.ne.s32.totalorder %s32, %s35
    %p44 = scmp.eq.s32.totalorder %s15, 1
    %p45 = por %p43, %p44
    %p46 = scmp.ne.s32.totalorder %s35, %s36
    %p47 = scmp.eq.s32.totalorder %s15, 0
    %p48 = por %p46, %p47
    %p49 = scmp.ne.s32.totalorder %s35, %s36
    %p50 = scmp.eq.s32.totalorder %s16, 1
    %p51 = por %p49, %p50
    %p53 = scmp.ne.s32.totalorder %s36, %s52
    %p54 = scmp.eq.s32.totalorder %s16, 0
    %p55 = por %p53, %p54
    %s57 = sadd.s32 %s56, 1
    %p60 = scmp.eq.s32.totalorder %s10, 1
    %p61 = scmp.ne.s32.totalorder %s56, %s58
    %p62 = scmp.eq.s32.totalorder %s10, 0
    %p63 = por %p61, %p62
    %p64 = scmp.ne.s32.totalorder %s56, %s58
    %p65 = scmp.eq.s32.totalorder %s15, 1
    %p66 = por %p64, %p65
    %p67 = scmp.ne.s32.totalorder %s58, %s59
    %p68 = scmp.eq.s32.totalorder %s15, 0
    %p69 = por %p67, %p68
    %p70 = scmp.ne.s32.totalorder %s58, %s59
    %p71 = scmp.eq.s32.totalorder %s16, 1
    %p72 = por %p70, %p71
    %p74 = scmp.ne.s32.totalorder %s59, %s73
    %p75 = scmp.eq.s32.totalorder %s16, 0
    %p76 = por %p74, %p75
    %s77 = ssub.s32 %s17, %s29
    %s78 = ssub.s32 %s18, %s25
    %s79 = sor.u32 %s77, %s78
    %p80 = scmp.eq.s32.totalorder %s79, 0
    %s82 = sadd.s32 %s81, 1
    %s83 = scalar_select %p80, %s81, %s82
    %p86 = pneg %p80
    %p87 = scmp.eq.s32.totalorder %s10, 1
    %p88 = por %p86, %p87
    %p89 = scmp.ne.s32.totalorder %s81, %s84
    %p90 = scmp.eq.s32.totalorder %s10, 0
    %p91 = por %p89, %p90
    %p92 = scmp.ne.s32.totalorder %s81, %s84
    %p93 = scmp.eq.s32.totalorder %s15, 1
    %p94 = por %p92, %p93
    %p95 = scmp.ne.s32.totalorder %s84, %s85
    %p96 = scmp.eq.s32.totalorder %s15, 0
    %p97 = por %p95, %p96
    %p98 = scmp.ne.s32.totalorder %s84, %s85
    %p99 = scmp.eq.s32.totalorder %s16, 1
    %p100 = por %p98, %p99
    %p102 = scmp.ne.s32.totalorder %s85, %s101
    %p103 = scmp.eq.s32.totalorder %s16, 0
    %p104 = por %p102, %p103
    %s105 = ssub.s32 %s17, %s29
    %s106 = ssub.s32 %s18, %s25
    %s107 = sor.u32 %s105, %s106
    %p108 = scmp.eq.s32.totalorder %s107, 0
    %s110 = sadd.s32 %s109, 1
    %s111 = scalar_select %p108, %s109, %s110
    %p114 = pneg %p108
    %p115 = scmp.eq.s32.totalorder %s10, 1
    %p116 = por %p114, %p115
    %p117 = scmp.ne.s32.totalorder %s109, %s112
    %p118 = scmp.eq.s32.totalorder %s10, 0
    %p119 = por %p117, %p118
    %p120 = scmp.ne.s32.totalorder %s109, %s112
    %p121 = scmp.eq.s32.totalorder %s15, 1
    %p122 = por %p120, %p121
    %p123 = scmp.ne.s32.totalorder %s112, %s113
    %p124 = scmp.eq.s32.totalorder %s15, 0
    %p125 = por %p123, %p124
    %p126 = scmp.ne.s32.totalorder %s112, %s113
    %p127 = scmp.eq.s32.totalorder %s16, 1
    %p128 = por %p126, %p127
    %p130 = scmp.ne.s32.totalorder %s113, %s129
    %p131 = scmp.eq.s32.totalorder %s16, 0
    %p132 = por %p130, %p131
    %p133 = scmp.le.s32.totalorder 1, %s10
    %p134 = scmp.lt.s32.totalorder %s10, 3
    %p135 = pnand %p133, %p134
    %p136 = pneg %p135
    // Predicated region
    $region9: #{build_deconv_forward.1} parent=5 // pred_check
      _
    $region10: #{build_deconv_forward.1} parent=5 // pred_check_branch
      %138 = sbr.rel (%p135) target = $region12
    $region11: #{build_deconv_forward.1} parent=5 // pred_region
      %s139 = ssub.s32 %s10, 1
      // Predicated region
      $region13: #{build_deconv_forward.1} parent=11 // pred_check
        %p140 = pneg %p69
      $region14: #{build_deconv_forward.1} parent=11 // pred_check_branch
        %142 = sbr.rel (%p140) target = $region16
      $region15: #{build_deconv_forward.1} parent=11 // pred_region
        _
      $region16: #{build_deconv_forward.1} parent=11 // pred_fallthru
        _
    $region12: #{build_deconv_forward.1} parent=5 // pred_fallthru
      _
    %p143 = scmp.lt.s32.totalorder %s10, 2
    // Predicated region
    $region17: #{build_deconv_forward.1} parent=5 // pred_check
      %p144 = pneg %p143
    $region18: #{build_deconv_forward.1} parent=5 // pred_check_branch
      %146 = sbr.rel (%p144) target = $region20
    $region19: #{build_deconv_forward.1} parent=5 // pred_region
      // Predicated region
      $region21: #{build_deconv_forward.1} parent=19 // pred_check
        %p147 = pneg %p42
      $region22: #{build_deconv_forward.1} parent=19 // pred_check_branch
        %149 = sbr.rel (%p147) target = $region24
      $region23: #{build_deconv_forward.1} parent=19 // pred_region
        %p150 = scmp.lt.s32.totalorder %s17, 1
        %s151 = scalar_select %p150, %s17, 1
        %s152 = smul.addr %s151, 54
        %s153 = smul.addr %s152, 4
        %s154 = scalar_lea.vmem %s0, %s153
      $region24: #{build_deconv_forward.1} parent=19 // pred_fallthru
        _
    $region20: #{build_deconv_forward.1} parent=5 // pred_fallthru
      _
    %p155 = scmp.le.s32.totalorder 1, %s10
    %p156 = scmp.lt.s32.totalorder %s10, 3
    %p157 = pnand %p155, %p156
    %p158 = pneg %p157
    // Predicated region
    $region25: #{build_deconv_forward.1} parent=5 // pred_check
      _
    $region26: #{build_deconv_forward.1} parent=5 // pred_check_branch
      %160 = sbr.rel (%p157) target = $region28
    $region27: #{build_deconv_forward.1} parent=5 // pred_region
      %s161 = ssub.s32 %s10, 1
      %p162 = scmp.lt.s32.totalorder %s19, 1
      %s163 = scalar_select %p162, %s19, 1
      %s164 = smul.addr %s163, 54
      %s165 = smul.addr %s164, 4
      %s166 = scalar_lea.vmem %s0, %s165
      %p167 = pneg %p48
      %p168 = pneg %p45
      %p169 = pneg %p69
      %p170 = pneg %p66
      %p171 = pneg %p97
      %p172 = pneg %p94
      %s173 = smul.u32 16, %s20
      %p174 = scmp.lt.s32.totalorder %s19, 1
      %s175 = scalar_select %p174, %s19, 1
      %p176 = scmp.lt.s32.totalorder %s173, 15
      %s177 = scalar_select %p176, %s173, 15
      %s178 = smul.addr %s177, 4
      %s179 = smul.addr %s175, 64
      %s180 = sadd.s32 %s178, %s179
      %s181 = smul.addr %s180, 4
      %s182 = scalar_lea.vmem %s2, %s181
      %p183 = pneg %p125
      %p184 = pneg %p122
      %p185 = scmp.lt.s32.totalorder %s19, 1
      %s186 = scalar_select %p185, %s19, 1
      %p187 = scmp.lt.s32.totalorder %s20, 0
      %s188 = scalar_select %p187, %s20, 0
      %s189 = sadd.s32 %s188, %s186
      %s190 = smul.addr %s189, 2
      %s191 = scalar_lea.vmem %s3, %s190
      %p192 = scmp.lt.s32.totalorder %s19, 1
      %s193 = scalar_select %p192, %s19, 1
      %s194 = smul.addr %s193, 54
      %s195 = smul.addr %s194, 4
      %s196 = scalar_lea.vmem %s0, %s195
      %s197 = smul.u32 16, %s20
      %p198 = scmp.lt.s32.totalorder %s19, 1
      %s199 = scalar_select %p198, %s19, 1
      %p200 = scmp.lt.s32.totalorder %s197, 15
      %s201 = scalar_select %p200, %s197, 15
      %s202 = smul.addr %s201, 4
      %s203 = smul.addr %s199, 64
      %s204 = sadd.s32 %s202, %s203
      %s205 = smul.addr %s204, 4
      %s206 = scalar_lea.vmem %s2, %s205
      %s207 = smul.u32 16, %s20
      %p208 = scmp.lt.s32.totalorder %s19, 1
      %s209 = scalar_select %p208, %s19, 1
      %p210 = scmp.lt.s32.totalorder %s20, 0
      %s211 = scalar_select %p210, %s20, 0
      %s212 = sadd.s32 %s211, %s209
      %s213 = smul.addr %s212, 2
      %s214 = scalar_lea.vmem %s3, %s213
      %s216 = smul.u32 %s20, 16
      %s217 = smul.u32 %s216, 3
      %s218 = smul.addr %s217, 4
      %s219 = scalar_lea.vmem %s196, %s218
      %v220 = vld [vmem:[%s219] sm:$0xf]
      %v221 = vld [vmem:[%s219 + $0x4] sm:$0xf]
      %v222 = vld [vmem:[%s219 + $0x8] sm:$0x1]
      %v223 = vld [vmem:[%s219 + $0xc] sm:$0xf]
      %v224 = vld [vmem:[%s219 + $0x10] sm:$0xf]
      %v225 = vld [vmem:[%s219 + $0x14] sm:$0x1]
      %v226 = vld [vmem:[%s219 + $0x18] sm:$0xf]
      %v227 = vld [vmem:[%s219 + $0x1c] sm:$0xf]
      %v228 = vld [vmem:[%s219 + $0x20] sm:$0x1]
      %v229 = vld [vmem:[%s219 + $0x24] sm:$0xf]
      %v230 = vld [vmem:[%s219 + $0x28] sm:$0xf]
      %v231 = vld [vmem:[%s219 + $0x2c] sm:$0x1]
      %v232 = vld [vmem:[%s219 + $0x30] sm:$0xf]
      %v233 = vld [vmem:[%s219 + $0x34] sm:$0xf]
      %v234 = vld [vmem:[%s219 + $0x38] sm:$0x1]
      %v235 = vld [vmem:[%s219 + $0x3c] sm:$0xf]
      %v236 = vld [vmem:[%s219 + $0x40] sm:$0xf]
      %v237 = vld [vmem:[%s219 + $0x44] sm:$0x1]
      %v238 = vld [vmem:[%s219 + $0x48] sm:$0xf]
      %v239 = vld [vmem:[%s219 + $0x4c] sm:$0xf]
      %v240 = vld [vmem:[%s219 + $0x50] sm:$0x1]
      %v241 = vld [vmem:[%s219 + $0x54] sm:$0xf]
      %v242 = vld [vmem:[%s219 + $0x58] sm:$0xf]
      %v243 = vld [vmem:[%s219 + $0x5c] sm:$0x1]
      %v244 = vld [vmem:[%s219 + $0x60] sm:$0xf]
      %v245 = vld [vmem:[%s219 + $0x64] sm:$0xf]
      %v246 = vld [vmem:[%s219 + $0x68] sm:$0x1]
      %v247 = vld [vmem:[%s219 + $0x6c] sm:$0xf]
      %v248 = vld [vmem:[%s219 + $0x70] sm:$0xf]
      %v249 = vld [vmem:[%s219 + $0x74] sm:$0x1]
      %v250 = vld [vmem:[%s219 + $0x78] sm:$0xf]
      %v251 = vld [vmem:[%s219 + $0x7c] sm:$0xf]
      %v252 = vld [vmem:[%s219 + $0x80] sm:$0x1]
      %v253 = vld [vmem:[%s219 + $0x84] sm:$0xf]
      %v254 = vld [vmem:[%s219 + $0x88] sm:$0xf]
      %v255 = vld [vmem:[%s219 + $0x8c] sm:$0x1]
      %v256 = vld [vmem:[%s219 + $0x90] sm:$0xf]
      %v257 = vld [vmem:[%s219 + $0x94] sm:$0xf]
      %v258 = vld [vmem:[%s219 + $0x98] sm:$0x1]
      %v259 = vld [vmem:[%s219 + $0x9c] sm:$0xf]
      %v260 = vld [vmem:[%s219 + $0xa0] sm:$0xf]
      %v261 = vld [vmem:[%s219 + $0xa4] sm:$0x1]
      %v262 = vld [vmem:[%s219 + $0xa8] sm:$0xf]
      %v263 = vld [vmem:[%s219 + $0xac] sm:$0xf]
      %v264 = vld [vmem:[%s219 + $0xb0] sm:$0x1]
      %v265 = vld [vmem:[%s219 + $0xb4] sm:$0xf]
      %v266 = vld [vmem:[%s219 + $0xb8] sm:$0xf]
      %v267 = vld [vmem:[%s219 + $0xbc] sm:$0x1]
      %v268 = vld [vmem:[%s219 + $0xc0] sm:$0xf]
      %v269 = vld [vmem:[%s219 + $0xc4] sm:$0xf]
      %v270 = vld [vmem:[%s219 + $0xc8] sm:$0x1]
      %v271 = vld [vmem:[%s219 + $0xcc] sm:$0xf]
      %v272 = vld [vmem:[%s219 + $0xd0] sm:$0xf]
      %v273 = vld [vmem:[%s219 + $0xd4] sm:$0x1]
      %v306 = vunpack.c.l.b16 %v220
      %v307 = vunpack.c.l.b16 %v221
      %v308 = vunpack.c.l.b16 %v223
      %v309 = vunpack.c.l.b16 %v224
      %v310 = vunpack.c.l.b16 %v226
      %v311 = vunpack.c.l.b16 %v227
      %v312 = vunpack.c.l.b16 %v229
      %v313 = vunpack.c.l.b16 %v230
      %v314 = vunpack.c.l.b16 %v232
      %v315 = vunpack.c.l.b16 %v233
      %v316 = vunpack.c.l.b16 %v235
      %v317 = vunpack.c.l.b16 %v236
      %v318 = vunpack.c.l.b16 %v238
      %v319 = vunpack.c.l.b16 %v239
      %v320 = vunpack.c.l.b16 %v241
      %v321 = vunpack.c.l.b16 %v242
      %v322 = vunpack.c.l.b16 %v244
      %v323 = vunpack.c.l.b16 %v245
      %v324 = vunpack.c.l.b16 %v247
      %v325 = vunpack.c.l.b16 %v248
      %v326 = vunpack.c.l.b16 %v250
      %v327 = vunpack.c.l.b16 %v251
      %v328 = vunpack.c.l.b16 %v253
      %v329 = vunpack.c.l.b16 %v254
      %v330 = vunpack.c.l.b16 %v256
      %v331 = vunpack.c.l.b16 %v257
      %v332 = vunpack.c.l.b16 %v259
      %v333 = vunpack.c.l.b16 %v260
      %v334 = vunpack.c.l.b16 %v262
      %v335 = vunpack.c.l.b16 %v263
      %v336 = vunpack.c.l.b16 %v265
      %v337 = vunpack.c.l.b16 %v266
      %v338 = vpack.c.b16 %v307, %v306
      %v339 = vpack.c.b16 %v309, %v308
      %v340 = vpack.c.b16 %v311, %v310
      %v341 = vpack.c.b16 %v313, %v312
      %v342 = vpack.c.b16 %v315, %v314
      %v343 = vpack.c.b16 %v317, %v316
      %v344 = vpack.c.b16 %v319, %v318
      %v345 = vpack.c.b16 %v321, %v320
      %v346 = vpack.c.b16 %v323, %v322
      %v347 = vpack.c.b16 %v325, %v324
      %v348 = vpack.c.b16 %v327, %v326
      %v349 = vpack.c.b16 %v329, %v328
      %v350 = vpack.c.b16 %v331, %v330
      %v351 = vpack.c.b16 %v333, %v332
      %v352 = vpack.c.b16 %v335, %v334
      %v353 = vpack.c.b16 %v337, %v336
      %v370 = vunpack.c.l.b16 %v222
      %v371 = vunpack.c.l.b16 %v225
      %v372 = vunpack.c.l.b16 %v228
      %v373 = vunpack.c.l.b16 %v231
      %v374 = vunpack.c.l.b16 %v234
      %v375 = vunpack.c.l.b16 %v237
      %v376 = vunpack.c.l.b16 %v240
      %v377 = vunpack.c.l.b16 %v243
      %v378 = vunpack.c.l.b16 %v246
      %v379 = vunpack.c.l.b16 %v249
      %v380 = vunpack.c.l.b16 %v252
      %v381 = vunpack.c.l.b16 %v255
      %v382 = vunpack.c.l.b16 %v258
      %v383 = vunpack.c.l.b16 %v261
      %v384 = vunpack.c.l.b16 %v264
      %v385 = vunpack.c.l.b16 %v267
      %v386 = vpack.c.b16 %v370, %v370
      %v387 = vpack.c.b16 %v371, %v371
      %v388 = vpack.c.b16 %v372, %v372
      %v389 = vpack.c.b16 %v373, %v373
      %v390 = vpack.c.b16 %v374, %v374
      %v391 = vpack.c.b16 %v375, %v375
      %v392 = vpack.c.b16 %v376, %v376
      %v393 = vpack.c.b16 %v377, %v377
      %v394 = vpack.c.b16 %v378, %v378
      %v395 = vpack.c.b16 %v379, %v379
      %v396 = vpack.c.b16 %v380, %v380
      %v397 = vpack.c.b16 %v381, %v381
      %v398 = vpack.c.b16 %v382, %v382
      %v399 = vpack.c.b16 %v383, %v383
      %v400 = vpack.c.b16 %v384, %v384
      %v401 = vpack.c.b16 %v385, %v385
      %vm402 = vsmask.f32 7424
      %v404 = vshrl.u32 %v338, 16
      %v406 = vshll.u32 %v338, 16
      %v408 = vrot.slane %v406, 1
      %v409 = vor.u32 %v404, %v408
      %v411 = vshll.u32 %v386, 16
      %v413 = vrot.slane %v411, 1
      %v414 = vsel %vm402, %v409, %v413
      %v416 = vshrl.u32 %v339, 16
      %v418 = vshll.u32 %v339, 16
      %v420 = vrot.slane %v418, 1
      %v421 = vor.u32 %v416, %v420
      %v423 = vshll.u32 %v387, 16
      %v425 = vrot.slane %v423, 1
      %v426 = vsel %vm402, %v421, %v425
      %v428 = vshrl.u32 %v340, 16
      %v430 = vshll.u32 %v340, 16
      %v432 = vrot.slane %v430, 1
      %v433 = vor.u32 %v428, %v432
      %v435 = vshll.u32 %v388, 16
      %v437 = vrot.slane %v435, 1
      %v438 = vsel %vm402, %v433, %v437
      %v440 = vshrl.u32 %v341, 16
      %v442 = vshll.u32 %v341, 16
      %v444 = vrot.slane %v442, 1
      %v445 = vor.u32 %v440, %v444
      %v447 = vshll.u32 %v389, 16
      %v449 = vrot.slane %v447, 1
      %v450 = vsel %vm402, %v445, %v449
      %v452 = vshrl.u32 %v342, 16
      %v454 = vshll.u32 %v342, 16
      %v456 = vrot.slane %v454, 1
      %v457 = vor.u32 %v452, %v456
      %v459 = vshll.u32 %v390, 16
      %v461 = vrot.slane %v459, 1
      %v462 = vsel %vm402, %v457, %v461
      %v464 = vshrl.u32 %v343, 16
      %v466 = vshll.u32 %v343, 16
      %v468 = vrot.slane %v466, 1
      %v469 = vor.u32 %v464, %v468
      %v471 = vshll.u32 %v391, 16
      %v473 = vrot.slane %v471, 1
      %v474 = vsel %vm402, %v469, %v473
      %v476 = vshrl.u32 %v344, 16
      %v478 = vshll.u32 %v344, 16
      %v480 = vrot.slane %v478, 1
      %v481 = vor.u32 %v476, %v480
      %v483 = vshll.u32 %v392, 16
      %v485 = vrot.slane %v483, 1
      %v486 = vsel %vm402, %v481, %v485
      %v488 = vshrl.u32 %v345, 16
      %v490 = vshll.u32 %v345, 16
      %v492 = vrot.slane %v490, 1
      %v493 = vor.u32 %v488, %v492
      %v495 = vshll.u32 %v393, 16
      %v497 = vrot.slane %v495, 1
      %v498 = vsel %vm402, %v493, %v497
      %v500 = vshrl.u32 %v346, 16
      %v502 = vshll.u32 %v346, 16
      %v504 = vrot.slane %v502, 1
      %v505 = vor.u32 %v500, %v504
      %v507 = vshll.u32 %v394, 16
      %v509 = vrot.slane %v507, 1
      %v510 = vsel %vm402, %v505, %v509
      %v512 = vshrl.u32 %v347, 16
      %v514 = vshll.u32 %v347, 16
      %v516 = vrot.slane %v514, 1
      %v517 = vor.u32 %v512, %v516
      %v519 = vshll.u32 %v395, 16
      %v521 = vrot.slane %v519, 1
      %v522 = vsel %vm402, %v517, %v521
      %v524 = vshrl.u32 %v348, 16
      %v526 = vshll.u32 %v348, 16
      %v528 = vrot.slane %v526, 1
      %v529 = vor.u32 %v524, %v528
      %v531 = vshll.u32 %v396, 16
      %v533 = vrot.slane %v531, 1
      %v534 = vsel %vm402, %v529, %v533
      %v536 = vshrl.u32 %v349, 16
      %v538 = vshll.u32 %v349, 16
      %v540 = vrot.slane %v538, 1
      %v541 = vor.u32 %v536, %v540
      %v543 = vshll.u32 %v397, 16
      %v545 = vrot.slane %v543, 1
      %v546 = vsel %vm402, %v541, %v545
      %v548 = vshrl.u32 %v350, 16
      %v550 = vshll.u32 %v350, 16
      %v552 = vrot.slane %v550, 1
      %v553 = vor.u32 %v548, %v552
      %v555 = vshll.u32 %v398, 16
      %v557 = vrot.slane %v555, 1
      %v558 = vsel %vm402, %v553, %v557
      %v560 = vshrl.u32 %v351, 16
      %v562 = vshll.u32 %v351, 16
      %v564 = vrot.slane %v562, 1
      %v565 = vor.u32 %v560, %v564
      %v567 = vshll.u32 %v399, 16
      %v569 = vrot.slane %v567, 1
      %v570 = vsel %vm402, %v565, %v569
      %v572 = vshrl.u32 %v352, 16
      %v574 = vshll.u32 %v352, 16
      %v576 = vrot.slane %v574, 1
      %v577 = vor.u32 %v572, %v576
      %v579 = vshll.u32 %v400, 16
      %v581 = vrot.slane %v579, 1
      %v582 = vsel %vm402, %v577, %v581
      %v584 = vshrl.u32 %v353, 16
      %v586 = vshll.u32 %v353, 16
      %v588 = vrot.slane %v586, 1
      %v589 = vor.u32 %v584, %v588
      %v591 = vshll.u32 %v401, 16
      %v593 = vrot.slane %v591, 1
      %v594 = vsel %vm402, %v589, %v593
      %595 = vrot.lane.b32.xlu0 %v414, 4
      %v596 = vpop.permute.xlu0 %595
      %597 = vrot.lane.b32.xlu0 %v426, 4
      %v598 = vpop.permute.xlu0 %597
      %599 = vrot.lane.b32.xlu0 %v438, 4
      %v600 = vpop.permute.xlu0 %599
      %601 = vrot.lane.b32.xlu0 %v450, 4
      %v602 = vpop.permute.xlu0 %601
      %603 = vrot.lane.b32.xlu0 %v462, 4
      %v604 = vpop.permute.xlu0 %603
      %605 = vrot.lane.b32.xlu0 %v474, 4
      %v606 = vpop.permute.xlu0 %605
      %607 = vrot.lane.b32.xlu0 %v486, 4
      %v608 = vpop.permute.xlu0 %607
      %609 = vrot.lane.b32.xlu0 %v498, 4
      %v610 = vpop.permute.xlu0 %609
      %611 = vrot.lane.b32.xlu0 %v510, 4
      %v612 = vpop.permute.xlu0 %611
      %613 = vrot.lane.b32.xlu0 %v522, 4
      %v614 = vpop.permute.xlu0 %613
      %615 = vrot.lane.b32.xlu0 %v534, 4
      %v616 = vpop.permute.xlu0 %615
      %617 = vrot.lane.b32.xlu0 %v546, 4
      %v618 = vpop.permute.xlu0 %617
      %619 = vrot.lane.b32.xlu0 %v558, 4
      %v620 = vpop.permute.xlu0 %619
      %621 = vrot.lane.b32.xlu0 %v570, 4
      %v622 = vpop.permute.xlu0 %621
      %623 = vrot.lane.b32.xlu0 %v582, 4
      %v624 = vpop.permute.xlu0 %623
      %625 = vrot.lane.b32.xlu0 %v594, 4
      %v626 = vpop.permute.xlu0 %625
      %vm627 = vcmask 1046528
      %v628 = vrot.slane %v338, 1
      %v629 = vrot.slane %v386, 1
      %v630 = vsel %vm627, %v628, %v629
      %v631 = vrot.slane %v339, 1
      %v632 = vrot.slane %v387, 1
      %v633 = vsel %vm627, %v631, %v632
      %v634 = vrot.slane %v340, 1
      %v635 = vrot.slane %v388, 1
      %v636 = vsel %vm627, %v634, %v635
      %v637 = vrot.slane %v341, 1
      %v638 = vrot.slane %v389, 1
      %v639 = vsel %vm627, %v637, %v638
      %v640 = vrot.slane %v342, 1
      %v641 = vrot.slane %v390, 1
      %v642 = vsel %vm627, %v640, %v641
      %v643 = vrot.slane %v343, 1
      %v644 = vrot.slane %v391, 1
      %v645 = vsel %vm627, %v643, %v644
      %v646 = vrot.slane %v344, 1
      %v647 = vrot.slane %v392, 1
      %v648 = vsel %vm627, %v646, %v647
      %v649 = vrot.slane %v345, 1
      %v650 = vrot.slane %v393, 1
      %v651 = vsel %vm627, %v649, %v650
      %v652 = vrot.slane %v346, 1
      %v653 = vrot.slane %v394, 1
      %v654 = vsel %vm627, %v652, %v653
      %v655 = vrot.slane %v347, 1
      %v656 = vrot.slane %v395, 1
      %v657 = vsel %vm627, %v655, %v656
      %v658 = vrot.slane %v348, 1
      %v659 = vrot.slane %v396, 1
      %v660 = vsel %vm627, %v658, %v659
      %v661 = vrot.slane %v349, 1
      %v662 = vrot.slane %v397, 1
      %v663 = vsel %vm627, %v661, %v662
      %v664 = vrot.slane %v350, 1
      %v665 = vrot.slane %v398, 1
      %v666 = vsel %vm627, %v664, %v665
      %v667 = vrot.slane %v351, 1
      %v668 = vrot.slane %v399, 1
      %v669 = vsel %vm627, %v667, %v668
      %v670 = vrot.slane %v352, 1
      %v671 = vrot.slane %v400, 1
      %v672 = vsel %vm627, %v670, %v671
      %v673 = vrot.slane %v353, 1
      %v674 = vrot.slane %v401, 1
      %v675 = vsel %vm627, %v673, %v674
      %676 = vrot.lane.b32.xlu0 %v630, 8
      %v677 = vpop.permute.xlu0 %676
      %678 = vrot.lane.b32.xlu0 %v633, 8
      %v679 = vpop.permute.xlu0 %678
      %680 = vrot.lane.b32.xlu0 %v636, 8
      %v681 = vpop.permute.xlu0 %680
      %682 = vrot.lane.b32.xlu0 %v639, 8
      %v683 = vpop.permute.xlu0 %682
      %684 = vrot.lane.b32.xlu0 %v642, 8
      %v685 = vpop.permute.xlu0 %684
      %686 = vrot.lane.b32.xlu0 %v645, 8
      %v687 = vpop.permute.xlu0 %686
      %688 = vrot.lane.b32.xlu0 %v648, 8
      %v689 = vpop.permute.xlu0 %688
      %690 = vrot.lane.b32.xlu0 %v651, 8
      %v691 = vpop.permute.xlu0 %690
      %692 = vrot.lane.b32.xlu0 %v654, 8
      %v693 = vpop.permute.xlu0 %692
      %694 = vrot.lane.b32.xlu0 %v657, 8
      %v695 = vpop.permute.xlu0 %694
      %696 = vrot.lane.b32.xlu0 %v660, 8
      %v697 = vpop.permute.xlu0 %696
      %698 = vrot.lane.b32.xlu0 %v663, 8
      %v699 = vpop.permute.xlu0 %698
      %700 = vrot.lane.b32.xlu0 %v666, 8
      %v701 = vpop.permute.xlu0 %700
      %702 = vrot.lane.b32.xlu0 %v669, 8
      %v703 = vpop.permute.xlu0 %702
      %704 = vrot.lane.b32.xlu0 %v672, 8
      %v705 = vpop.permute.xlu0 %704
      %706 = vrot.lane.b32.xlu0 %v675, 8
      %v707 = vpop.permute.xlu0 %706
      %v710 = vunpack.c.l.b16 %v268
      %v711 = vunpack.c.l.b16 %v269
      %v712 = vpack.c.b16 %v711, %v710
      %713 = vrot.lane.b32.xlu0 %v339, 12
      %v714 = vpop.permute.xlu0 %713
      %715 = vrot.lane.b32.xlu0 %v340, 12
      %v716 = vpop.permute.xlu0 %715
      %717 = vrot.lane.b32.xlu0 %v341, 12
      %v718 = vpop.permute.xlu0 %717
      %719 = vrot.lane.b32.xlu0 %v342, 12
      %v720 = vpop.permute.xlu0 %719
      %721 = vrot.lane.b32.xlu0 %v343, 12
      %v722 = vpop.permute.xlu0 %721
      %723 = vrot.lane.b32.xlu0 %v344, 12
      %v724 = vpop.permute.xlu0 %723
      %725 = vrot.lane.b32.xlu0 %v345, 12
      %v726 = vpop.permute.xlu0 %725
      %727 = vrot.lane.b32.xlu0 %v346, 12
      %v728 = vpop.permute.xlu0 %727
      %729 = vrot.lane.b32.xlu0 %v347, 12
      %v730 = vpop.permute.xlu0 %729
      %731 = vrot.lane.b32.xlu0 %v348, 12
      %v732 = vpop.permute.xlu0 %731
      %733 = vrot.lane.b32.xlu0 %v349, 12
      %v734 = vpop.permute.xlu0 %733
      %735 = vrot.lane.b32.xlu0 %v350, 12
      %v736 = vpop.permute.xlu0 %735
      %737 = vrot.lane.b32.xlu0 %v351, 12
      %v738 = vpop.permute.xlu0 %737
      %739 = vrot.lane.b32.xlu0 %v352, 12
      %v740 = vpop.permute.xlu0 %739
      %741 = vrot.lane.b32.xlu0 %v353, 12
      %v742 = vpop.permute.xlu0 %741
      %743 = vrot.lane.b32.xlu0 %v712, 12
      %v744 = vpop.permute.xlu0 %743
      %v746 = vunpack.c.l.b16 %v270
      %v747 = vpack.c.b16 %v746, %v746
      %v749 = vshrl.u32 %v712, 16
      %v751 = vshll.u32 %v712, 16
      %v753 = vrot.slane %v751, 1
      %v754 = vor.u32 %v749, %v753
      %v756 = vshll.u32 %v747, 16
      %v758 = vrot.slane %v756, 1
      %v759 = vsel %vm402, %v754, %v758
      %760 = vrot.lane.b32.xlu0 %v426, 16
      %v761 = vpop.permute.xlu0 %760
      %762 = vrot.lane.b32.xlu0 %v438, 16
      %v763 = vpop.permute.xlu0 %762
      %764 = vrot.lane.b32.xlu0 %v450, 16
      %v765 = vpop.permute.xlu0 %764
      %766 = vrot.lane.b32.xlu0 %v462, 16
      %v767 = vpop.permute.xlu0 %766
      %768 = vrot.lane.b32.xlu0 %v474, 16
      %v769 = vpop.permute.xlu0 %768
      %770 = vrot.lane.b32.xlu0 %v486, 16
      %v771 = vpop.permute.xlu0 %770
      %772 = vrot.lane.b32.xlu0 %v498, 16
      %v773 = vpop.permute.xlu0 %772
      %774 = vrot.lane.b32.xlu0 %v510, 16
      %v775 = vpop.permute.xlu0 %774
      %776 = vrot.lane.b32.xlu0 %v522, 16
      %v777 = vpop.permute.xlu0 %776
      %778 = vrot.lane.b32.xlu0 %v534, 16
      %v779 = vpop.permute.xlu0 %778
      %780 = vrot.lane.b32.xlu0 %v546, 16
      %v781 = vpop.permute.xlu0 %780
      %782 = vrot.lane.b32.xlu0 %v558, 16
      %v783 = vpop.permute.xlu0 %782
      %784 = vrot.lane.b32.xlu0 %v570, 16
      %v785 = vpop.permute.xlu0 %784
      %786 = vrot.lane.b32.xlu0 %v582, 16
      %v787 = vpop.permute.xlu0 %786
      %788 = vrot.lane.b32.xlu0 %v594, 16
      %v789 = vpop.permute.xlu0 %788
      %790 = vrot.lane.b32.xlu0 %v759, 16
      %v791 = vpop.permute.xlu0 %790
      %v792 = vrot.slane %v712, 1
      %v793 = vrot.slane %v747, 1
      %v794 = vsel %vm627, %v792, %v793
      %795 = vrot.lane.b32.xlu0 %v633, 20
      %v796 = vpop.permute.xlu0 %795
      %797 = vrot.lane.b32.xlu0 %v636, 20
      %v798 = vpop.permute.xlu0 %797
      %799 = vrot.lane.b32.xlu0 %v639, 20
      %v800 = vpop.permute.xlu0 %799
      %801 = vrot.lane.b32.xlu0 %v642, 20
      %v802 = vpop.permute.xlu0 %801
      %803 = vrot.lane.b32.xlu0 %v645, 20
      %v804 = vpop.permute.xlu0 %803
      %805 = vrot.lane.b32.xlu0 %v648, 20
      %v806 = vpop.permute.xlu0 %805
      %807 = vrot.lane.b32.xlu0 %v651, 20
      %v808 = vpop.permute.xlu0 %807
      %809 = vrot.lane.b32.xlu0 %v654, 20
      %v810 = vpop.permute.xlu0 %809
      %811 = vrot.lane.b32.xlu0 %v657, 20
      %v812 = vpop.permute.xlu0 %811
      %813 = vrot.lane.b32.xlu0 %v660, 20
      %v814 = vpop.permute.xlu0 %813
      %815 = vrot.lane.b32.xlu0 %v663, 20
      %v816 = vpop.permute.xlu0 %815
      %817 = vrot.lane.b32.xlu0 %v666, 20
      %v818 = vpop.permute.xlu0 %817
      %819 = vrot.lane.b32.xlu0 %v669, 20
      %v820 = vpop.permute.xlu0 %819
      %821 = vrot.lane.b32.xlu0 %v672, 20
      %v822 = vpop.permute.xlu0 %821
      %823 = vrot.lane.b32.xlu0 %v675, 20
      %v824 = vpop.permute.xlu0 %823
      %825 = vrot.lane.b32.xlu0 %v794, 20
      %v826 = vpop.permute.xlu0 %825
      %vm827 = vcmask 31744
      %v829 = vsel %vm827, %v338, %v596
      %v831 = vsel %vm827, %v339, %v598
      %v833 = vsel %vm827, %v340, %v600
      %v835 = vsel %vm827, %v341, %v602
      %v837 = vsel %vm827, %v342, %v604
      %v839 = vsel %vm827, %v343, %v606
      %v841 = vsel %vm827, %v344, %v608
      %v843 = vsel %vm827, %v345, %v610
      %v845 = vsel %vm827, %v346, %v612
      %v847 = vsel %vm827, %v347, %v614
      %v849 = vsel %vm827, %v348, %v616
      %v851 = vsel %vm827, %v349, %v618
      %v853 = vsel %vm827, %v350, %v620
      %v855 = vsel %vm827, %v351, %v622
      %v857 = vsel %vm827, %v352, %v624
      %v859 = vsel %vm827, %v353, %v626
      %vm860 = vcmask 64512
      %v862 = vsel %vm860, %v829, %v677
      %v864 = vsel %vm860, %v831, %v679
      %v866 = vsel %vm860, %v833, %v681
      %v868 = vsel %vm860, %v835, %v683
      %v870 = vsel %vm860, %v837, %v685
      %v872 = vsel %vm860, %v839, %v687
      %v874 = vsel %vm860, %v841, %v689
      %v876 = vsel %vm860, %v843, %v691
      %v878 = vsel %vm860, %v845, %v693
      %v880 = vsel %vm860, %v847, %v695
      %v882 = vsel %vm860, %v849, %v697
      %v884 = vsel %vm860, %v851, %v699
      %v886 = vsel %vm860, %v853, %v701
      %v888 = vsel %vm860, %v855, %v703
      %v890 = vsel %vm860, %v857, %v705
      %v892 = vsel %vm860, %v859, %v707
      %vm893 = vcmask 97280
      %v895 = vsel %vm893, %v862, %v714
      %v897 = vsel %vm893, %v864, %v716
      %v899 = vsel %vm893, %v866, %v718
      %v901 = vsel %vm893, %v868, %v720
      %v903 = vsel %vm893, %v870, %v722
      %v905 = vsel %vm893, %v872, %v724
      %v907 = vsel %vm893, %v874, %v726
      %v909 = vsel %vm893, %v876, %v728
      %v911 = vsel %vm893, %v878, %v730
      %v913 = vsel %vm893, %v880, %v732
      %v915 = vsel %vm893, %v882, %v734
      %v917 = vsel %vm893, %v884, %v736
      %v919 = vsel %vm893, %v886, %v738
      %v921 = vsel %vm893, %v888, %v740
      %v923 = vsel %vm893, %v890, %v742
      %v925 = vsel %vm893, %v892, %v744
      %vm926 = vcmask 130048
      %v928 = vsel %vm926, %v895, %v761
      %v930 = vsel %vm926, %v897, %v763
      %v932 = vsel %vm926, %v899, %v765
      %v934 = vsel %vm926, %v901, %v767
      %v936 = vsel %vm926, %v903, %v769
      %v938 = vsel %vm926, %v905, %v771
      %v940 = vsel %vm926, %v907, %v773
      %v942 = vsel %vm926, %v909, %v775
      %v944 = vsel %vm926, %v911, %v777
      %v946 = vsel %vm926, %v913, %v779
      %v948 = vsel %vm926, %v915, %v781
      %v950 = vsel %vm926, %v917, %v783
      %v952 = vsel %vm926, %v919, %v785
      %v954 = vsel %vm926, %v921, %v787
      %v956 = vsel %vm926, %v923, %v789
      %v958 = vsel %vm926, %v925, %v791
      %vm959 = vcmask 162816
      %v961 = vsel %vm959, %v928, %v796
      %v963 = vsel %vm959, %v930, %v798
      %v965 = vsel %vm959, %v932, %v800
      %v967 = vsel %vm959, %v934, %v802
      %v969 = vsel %vm959, %v936, %v804
      %v971 = vsel %vm959, %v938, %v806
      %v973 = vsel %vm959, %v940, %v808
      %v975 = vsel %vm959, %v942, %v810
      %v977 = vsel %vm959, %v944, %v812
      %v979 = vsel %vm959, %v946, %v814
      %v981 = vsel %vm959, %v948, %v816
      %v983 = vsel %vm959, %v950, %v818
      %v985 = vsel %vm959, %v952, %v820
      %v987 = vsel %vm959, %v954, %v822
      %v989 = vsel %vm959, %v956, %v824
      %v991 = vsel %vm959, %v958, %v826
      %v992 = vld [vmem:[%s1] sm:$0xf]
      %v993 = vld [vmem:[%s1 + $0x4] sm:$0xf]
      %v994 = vld [vmem:[%s1 + $0x8] sm:$0xf]
      %v998 = vunpack.c.l.b16 %v992
      %v999 = vunpack.c.l.b16 %v993
      %v1000 = vunpack.c.l.b16 %v994
      %v1001 = vpack.c.b16 %v999, %v998
      %v1002 = vpack.c.b16 %v1000, %v1000
      %vm1004 = vcmask 195584
      %v1005 = vsel %vm1004, %v961, 0
      %v1007 = vsel %vm1004, %v963, 0
      %v1009 = vsel %vm1004, %v965, 0
      %v1011 = vsel %vm1004, %v967, 0
      %v1013 = vsel %vm1004, %v969, 0
      %v1015 = vsel %vm1004, %v971, 0
      %v1017 = vsel %vm1004, %v973, 0
      %v1019 = vsel %vm1004, %v975, 0
      %v1021 = vsel %vm1004, %v977, 0
      %v1023 = vsel %vm1004, %v979, 0
      %v1025 = vsel %vm1004, %v981, 0
      %v1027 = vsel %vm1004, %v983, 0
      %v1029 = vsel %vm1004, %v985, 0
      %v1031 = vsel %vm1004, %v987, 0
      %v1033 = vsel %vm1004, %v989, 0
      %v1035 = vsel %vm1004, %v991, 0
      %vm1037 = vcmask 1043456
      %v1039 = vsel %vm1037, %v1002, 0
      %1041 = vmatpush.bf16.msra.mxu0 0
      %1042 = vmatpush.bf16.msra.mxu0 0
      %1043 = vmatpush.bf16.msra.mxu0 0
      %1044 = vmatpush.bf16.msra.mxu0 0
      %1045 = vmatpush.bf16.msra.mxu0 0
      %1046 = vmatpush.bf16.msra.mxu0 0
      %1047 = vmatpush.bf16.msra.mxu0 %v1039
      %1048 = vmatpush.bf16.msra.mxu0 %v1001
      %1049 = vmatmul.bf16.gmra.mxu0 %v1005
      %v1050 = vpop.f32.mrf.mxu0
      %v1051 = vadd.f32 0.0, %v1050
      %v1052 = vpop.f32.mrf.mxu0
      %v1053 = vadd.f32 0.0, %v1052
      %1054 = vmatmul.bf16.gmra.mxu0 %v1007
      %v1055 = vpop.f32.mrf.mxu0
      %v1056 = vadd.f32 0.0, %v1055
      %v1057 = vpop.f32.mrf.mxu0
      %v1058 = vadd.f32 0.0, %v1057
      %1059 = vmatmul.bf16.gmra.mxu0 %v1009
      %v1060 = vpop.f32.mrf.mxu0
      %v1061 = vadd.f32 0.0, %v1060
      %v1062 = vpop.f32.mrf.mxu0
      %v1063 = vadd.f32 0.0, %v1062
      %1064 = vmatmul.bf16.gmra.mxu0 %v1011
      %v1065 = vpop.f32.mrf.mxu0
      %v1066 = vadd.f32 0.0, %v1065
      %v1067 = vpop.f32.mrf.mxu0
      %v1068 = vadd.f32 0.0, %v1067
      %1069 = vmatmul.bf16.gmra.mxu0 %v1013
      %v1070 = vpop.f32.mrf.mxu0
      %v1071 = vadd.f32 0.0, %v1070
      %v1072 = vpop.f32.mrf.mxu0
      %v1073 = vadd.f32 0.0, %v1072
      %1074 = vmatmul.bf16.gmra.mxu0 %v1015
      %v1075 = vpop.f32.mrf.mxu0
      %v1076 = vadd.f32 0.0, %v1075
      %v1077 = vpop.f32.mrf.mxu0
      %v1078 = vadd.f32 0.0, %v1077
      %1079 = vmatmul.bf16.gmra.mxu0 %v1017
      %v1080 = vpop.f32.mrf.mxu0
      %v1081 = vadd.f32 0.0, %v1080
      %v1082 = vpop.f32.mrf.mxu0
      %v1083 = vadd.f32 0.0, %v1082
      %1084 = vmatmul.bf16.gmra.mxu0 %v1019
      %v1085 = vpop.f32.mrf.mxu0
      %v1086 = vadd.f32 0.0, %v1085
      %v1087 = vpop.f32.mrf.mxu0
      %v1088 = vadd.f32 0.0, %v1087
      %1089 = vmatmul.bf16.gmra.mxu0 %v1021
      %v1090 = vpop.f32.mrf.mxu0
      %v1091 = vadd.f32 0.0, %v1090
      %v1092 = vpop.f32.mrf.mxu0
      %v1093 = vadd.f32 0.0, %v1092
      %1094 = vmatmul.bf16.gmra.mxu0 %v1023
      %v1095 = vpop.f32.mrf.mxu0
      %v1096 = vadd.f32 0.0, %v1095
      %v1097 = vpop.f32.mrf.mxu0
      %v1098 = vadd.f32 0.0, %v1097
      %1099 = vmatmul.bf16.gmra.mxu0 %v1025
      %v1100 = vpop.f32.mrf.mxu0
      %v1101 = vadd.f32 0.0, %v1100
      %v1102 = vpop.f32.mrf.mxu0
      %v1103 = vadd.f32 0.0, %v1102
      %1104 = vmatmul.bf16.gmra.mxu0 %v1027
      %v1105 = vpop.f32.mrf.mxu0
      %v1106 = vadd.f32 0.0, %v1105
      %v1107 = vpop.f32.mrf.mxu0
      %v1108 = vadd.f32 0.0, %v1107
      %1109 = vmatmul.bf16.gmra.mxu0 %v1029
      %v1110 = vpop.f32.mrf.mxu0
      %v1111 = vadd.f32 0.0, %v1110
      %v1112 = vpop.f32.mrf.mxu0
      %v1113 = vadd.f32 0.0, %v1112
      %1114 = vmatmul.bf16.gmra.mxu0 %v1031
      %v1115 = vpop.f32.mrf.mxu0
      %v1116 = vadd.f32 0.0, %v1115
      %v1117 = vpop.f32.mrf.mxu0
      %v1118 = vadd.f32 0.0, %v1117
      %1119 = vmatmul.bf16.gmra.mxu0 %v1033
      %v1120 = vpop.f32.mrf.mxu0
      %v1121 = vadd.f32 0.0, %v1120
      %v1122 = vpop.f32.mrf.mxu0
      %v1123 = vadd.f32 0.0, %v1122
      %1124 = vmatmul.bf16.gmra.mxu0 %v1035
      %v1125 = vpop.f32.mrf.mxu0
      %v1126 = vadd.f32 0.0, %v1125
      %v1127 = vpop.f32.mrf.mxu0
      %v1128 = vadd.f32 0.0, %v1127
      %1129 = vdwg.mxu0
      %v1130 = vpack.c.bf16 %v1051, %v1051
      %v1131 = vpack.c.bf16 %v1053, %v1053
      %v1132 = vpack.c.bf16 %v1056, %v1056
      %v1133 = vpack.c.bf16 %v1058, %v1058
      %v1134 = vpack.c.bf16 %v1061, %v1061
      %v1135 = vpack.c.bf16 %v1063, %v1063
      %v1136 = vpack.c.bf16 %v1066, %v1066
      %v1137 = vpack.c.bf16 %v1068, %v1068
      %v1138 = vpack.c.bf16 %v1071, %v1071
      %v1139 = vpack.c.bf16 %v1073, %v1073
      %v1140 = vpack.c.bf16 %v1076, %v1076
      %v1141 = vpack.c.bf16 %v1078, %v1078
      %v1142 = vpack.c.bf16 %v1081, %v1081
      %v1143 = vpack.c.bf16 %v1083, %v1083
      %v1144 = vpack.c.bf16 %v1086, %v1086
      %v1145 = vpack.c.bf16 %v1088, %v1088
      %v1146 = vpack.c.bf16 %v1091, %v1091
      %v1147 = vpack.c.bf16 %v1093, %v1093
      %v1148 = vpack.c.bf16 %v1096, %v1096
      %v1149 = vpack.c.bf16 %v1098, %v1098
      %v1150 = vpack.c.bf16 %v1101, %v1101
      %v1151 = vpack.c.bf16 %v1103, %v1103
      %v1152 = vpack.c.bf16 %v1106, %v1106
      %v1153 = vpack.c.bf16 %v1108, %v1108
      %v1154 = vpack.c.bf16 %v1111, %v1111
      %v1155 = vpack.c.bf16 %v1113, %v1113
      %v1156 = vpack.c.bf16 %v1116, %v1116
      %v1157 = vpack.c.bf16 %v1118, %v1118
      %v1158 = vpack.c.bf16 %v1121, %v1121
      %v1159 = vpack.c.bf16 %v1123, %v1123
      %v1160 = vpack.c.bf16 %v1126, %v1126
      %v1161 = vpack.c.bf16 %v1128, %v1128
      %vm1162 = vcmask 125952
      %1163 = vst.msk [vmem:[%s206] sm:$0xf] %vm1162, %v1130
      %1164 = vst.msk [vmem:[%s206 + $0x4] sm:$0xf] %vm1162, %v1131
      %1165 = vst.msk [vmem:[%s206 + $0x10] sm:$0xf] %vm1162, %v1132
      %1166 = vst.msk [vmem:[%s206 + $0x14] sm:$0xf] %vm1162, %v1133
      %1167 = vst.msk [vmem:[%s206 + $0x20] sm:$0xf] %vm1162, %v1134
      %1168 = vst.msk [vmem:[%s206 + $0x24] sm:$0xf] %vm1162, %v1135
      %1169 = vst.msk [vmem:[%s206 + $0x30] sm:$0xf] %vm1162, %v1136
      %1170 = vst.msk [vmem:[%s206 + $0x34] sm:$0xf] %vm1162, %v1137
      %1171 = vst.msk [vmem:[%s206 + $0x40] sm:$0xf] %vm1162, %v1138
      %1172 = vst.msk [vmem:[%s206 + $0x44] sm:$0xf] %vm1162, %v1139
      %1173 = vst.msk [vmem:[%s206 + $0x50] sm:$0xf] %vm1162, %v1140
      %1174 = vst.msk [vmem:[%s206 + $0x54] sm:$0xf] %vm1162, %v1141
      %1175 = vst.msk [vmem:[%s206 + $0x60] sm:$0xf] %vm1162, %v1142
      %1176 = vst.msk [vmem:[%s206 + $0x64] sm:$0xf] %vm1162, %v1143
      %1177 = vst.msk [vmem:[%s206 + $0x70] sm:$0xf] %vm1162, %v1144
      %1178 = vst.msk [vmem:[%s206 + $0x74] sm:$0xf] %vm1162, %v1145
      %1179 = vst.msk [vmem:[%s206 + $0x80] sm:$0xf] %vm1162, %v1146
      %1180 = vst.msk [vmem:[%s206 + $0x84] sm:$0xf] %vm1162, %v1147
      %1181 = vst.msk [vmem:[%s206 + $0x90] sm:$0xf] %vm1162, %v1148
      %1182 = vst.msk [vmem:[%s206 + $0x94] sm:$0xf] %vm1162, %v1149
      %1183 = vst.msk [vmem:[%s206 + $0xa0] sm:$0xf] %vm1162, %v1150
      %1184 = vst.msk [vmem:[%s206 + $0xa4] sm:$0xf] %vm1162, %v1151
      %1185 = vst.msk [vmem:[%s206 + $0xb0] sm:$0xf] %vm1162, %v1152
      %1186 = vst.msk [vmem:[%s206 + $0xb4] sm:$0xf] %vm1162, %v1153
      %1187 = vst.msk [vmem:[%s206 + $0xc0] sm:$0xf] %vm1162, %v1154
      %1188 = vst.msk [vmem:[%s206 + $0xc4] sm:$0xf] %vm1162, %v1155
      %1189 = vst.msk [vmem:[%s206 + $0xd0] sm:$0xf] %vm1162, %v1156
      %1190 = vst.msk [vmem:[%s206 + $0xd4] sm:$0xf] %vm1162, %v1157
      %1191 = vst.msk [vmem:[%s206 + $0xe0] sm:$0xf] %vm1162, %v1158
      %1192 = vst.msk [vmem:[%s206 + $0xe4] sm:$0xf] %vm1162, %v1159
      %1193 = vst.msk [vmem:[%s206 + $0xf0] sm:$0xf] %vm1162, %v1160
      %1194 = vst.msk [vmem:[%s206 + $0xf4] sm:$0xf] %vm1162, %v1161
      %v1195 = vsel %vm926, %v1051, 0.0
      %v1196 = vsel %vm926, %v1053, 0.0
      %v1197 = vadd.f32 %v1195, %v1196
      %v1198 = vsel %vm926, %v1056, 0.0
      %v1199 = vadd.f32 %v1197, %v1198
      %v1200 = vsel %vm926, %v1058, 0.0
      %v1201 = vadd.f32 %v1199, %v1200
      %v1202 = vsel %vm926, %v1061, 0.0
      %v1203 = vadd.f32 %v1201, %v1202
      %v1204 = vsel %vm926, %v1063, 0.0
      %v1205 = vadd.f32 %v1203, %v1204
      %v1206 = vsel %vm926, %v1066, 0.0
      %v1207 = vadd.f32 %v1205, %v1206
      %v1208 = vsel %vm926, %v1068, 0.0
      %v1209 = vadd.f32 %v1207, %v1208
      %v1210 = vsel %vm926, %v1071, 0.0
      %v1211 = vadd.f32 %v1209, %v1210
      %v1212 = vsel %vm926, %v1073, 0.0
      %v1213 = vadd.f32 %v1211, %v1212
      %v1214 = vsel %vm926, %v1076, 0.0
      %v1215 = vadd.f32 %v1213, %v1214
      %v1216 = vsel %vm926, %v1078, 0.0
      %v1217 = vadd.f32 %v1215, %v1216
      %v1218 = vsel %vm926, %v1081, 0.0
      %v1219 = vadd.f32 %v1217, %v1218
      %v1220 = vsel %vm926, %v1083, 0.0
      %v1221 = vadd.f32 %v1219, %v1220
      %v1222 = vsel %vm926, %v1086, 0.0
      %v1223 = vadd.f32 %v1221, %v1222
      %v1224 = vsel %vm926, %v1088, 0.0
      %v1225 = vadd.f32 %v1223, %v1224
      %v1226 = vsel %vm926, %v1091, 0.0
      %v1227 = vadd.f32 %v1225, %v1226
      %v1228 = vsel %vm926, %v1093, 0.0
      %v1229 = vadd.f32 %v1227, %v1228
      %v1230 = vsel %vm926, %v1096, 0.0
      %v1231 = vadd.f32 %v1229, %v1230
      %v1232 = vsel %vm926, %v1098, 0.0
      %v1233 = vadd.f32 %v1231, %v1232
      %v1234 = vsel %vm926, %v1101, 0.0
      %v1235 = vadd.f32 %v1233, %v1234
      %v1236 = vsel %vm926, %v1103, 0.0
      %v1237 = vadd.f32 %v1235, %v1236
      %v1238 = vsel %vm926, %v1106, 0.0
      %v1239 = vadd.f32 %v1237, %v1238
      %v1240 = vsel %vm926, %v1108, 0.0
      %v1241 = vadd.f32 %v1239, %v1240
      %v1242 = vsel %vm926, %v1111, 0.0
      %v1243 = vadd.f32 %v1241, %v1242
      %v1244 = vsel %vm926, %v1113, 0.0
      %v1245 = vadd.f32 %v1243, %v1244
      %v1246 = vsel %vm926, %v1116, 0.0
      %v1247 = vadd.f32 %v1245, %v1246
      %v1248 = vsel %vm926, %v1118, 0.0
      %v1249 = vadd.f32 %v1247, %v1248
      %v1250 = vsel %vm926, %v1121, 0.0
      %v1251 = vadd.f32 %v1249, %v1250
      %v1252 = vsel %vm926, %v1123, 0.0
      %v1253 = vadd.f32 %v1251, %v1252
      %v1254 = vsel %vm926, %v1126, 0.0
      %v1255 = vadd.f32 %v1253, %v1254
      %v1256 = vsel %vm926, %v1128, 0.0
      %v1257 = vadd.f32 %v1255, %v1256
      %v1258 = vrot.slane %v1257, 4
      %v1259 = vadd.f32 %v1257, %v1258
      %v1260 = vrot.slane %v1259, 2
      %v1261 = vadd.f32 %v1259, %v1260
      %v1262 = vrot.slane %v1261, 1
      %v1263 = vadd.f32 %v1261, %v1262
      %v1264 = vadd.f32 %v1263, 0.0
      %v1265 = vmul.f32 %v1051, %v1051
      %v1266 = vmul.f32 %v1053, %v1053
      %v1267 = vmul.f32 %v1056, %v1056
      %v1268 = vmul.f32 %v1058, %v1058
      %v1269 = vmul.f32 %v1061, %v1061
      %v1270 = vmul.f32 %v1063, %v1063
      %v1271 = vmul.f32 %v1066, %v1066
      %v1272 = vmul.f32 %v1068, %v1068
      %v1273 = vmul.f32 %v1071, %v1071
      %v1274 = vmul.f32 %v1073, %v1073
      %v1275 = vmul.f32 %v1076, %v1076
      %v1276 = vmul.f32 %v1078, %v1078
      %v1277 = vmul.f32 %v1081, %v1081
      %v1278 = vmul.f32 %v1083, %v1083
      %v1279 = vmul.f32 %v1086, %v1086
      %v1280 = vmul.f32 %v1088, %v1088
      %v1281 = vmul.f32 %v1091, %v1091
      %v1282 = vmul.f32 %v1093, %v1093
      %v1283 = vmul.f32 %v1096, %v1096
      %v1284 = vmul.f32 %v1098, %v1098
      %v1285 = vmul.f32 %v1101, %v1101
      %v1286 = vmul.f32 %v1103, %v1103
      %v1287 = vmul.f32 %v1106, %v1106
      %v1288 = vmul.f32 %v1108, %v1108
      %v1289 = vmul.f32 %v1111, %v1111
      %v1290 = vmul.f32 %v1113, %v1113
      %v1291 = vmul.f32 %v1116, %v1116
      %v1292 = vmul.f32 %v1118, %v1118
      %v1293 = vmul.f32 %v1121, %v1121
      %v1294 = vmul.f32 %v1123, %v1123
      %v1295 = vmul.f32 %v1126, %v1126
      %v1296 = vmul.f32 %v1128, %v1128
      %v1297 = vsel %vm926, %v1265, 0.0
      %v1298 = vsel %vm926, %v1266, 0.0
      %v1299 = vadd.f32 %v1297, %v1298
      %v1300 = vsel %vm926, %v1267, 0.0
      %v1301 = vadd.f32 %v1299, %v1300
      %v1302 = vsel %vm926, %v1268, 0.0
      %v1303 = vadd.f32 %v1301, %v1302
      %v1304 = vsel %vm926, %v1269, 0.0
      %v1305 = vadd.f32 %v1303, %v1304
      %v1306 = vsel %vm926, %v1270, 0.0
      %v1307 = vadd.f32 %v1305, %v1306
      %v1308 = vsel %vm926, %v1271, 0.0
      %v1309 = vadd.f32 %v1307, %v1308
      %v1310 = vsel %vm926, %v1272, 0.0
      %v1311 = vadd.f32 %v1309, %v1310
      %v1312 = vsel %vm926, %v1273, 0.0
      %v1313 = vadd.f32 %v1311, %v1312
      %v1314 = vsel %vm926, %v1274, 0.0
      %v1315 = vadd.f32 %v1313, %v1314
      %v1316 = vsel %vm926, %v1275, 0.0
      %v1317 = vadd.f32 %v1315, %v1316
      %v1318 = vsel %vm926, %v1276, 0.0
      %v1319 = vadd.f32 %v1317, %v1318
      %v1320 = vsel %vm926, %v1277, 0.0
      %v1321 = vadd.f32 %v1319, %v1320
      %v1322 = vsel %vm926, %v1278, 0.0
      %v1323 = vadd.f32 %v1321, %v1322
      %v1324 = vsel %vm926, %v1279, 0.0
      %v1325 = vadd.f32 %v1323, %v1324
      %v1326 = vsel %vm926, %v1280, 0.0
      %v1327 = vadd.f32 %v1325, %v1326
      %v1328 = vsel %vm926, %v1281, 0.0
      %v1329 = vadd.f32 %v1327, %v1328
      %v1330 = vsel %vm926, %v1282, 0.0
      %v1331 = vadd.f32 %v1329, %v1330
      %v1332 = vsel %vm926, %v1283, 0.0
      %v1333 = vadd.f32 %v1331, %v1332
      %v1334 = vsel %vm926, %v1284, 0.0
      %v1335 = vadd.f32 %v1333, %v1334
      %v1336 = vsel %vm926, %v1285, 0.0
      %v1337 = vadd.f32 %v1335, %v1336
      %v1338 = vsel %vm926, %v1286, 0.0
      %v1339 = vadd.f32 %v1337, %v1338
      %v1340 = vsel %vm926, %v1287, 0.0
      %v1341 = vadd.f32 %v1339, %v1340
      %v1342 = vsel %vm926, %v1288, 0.0
      %v1343 = vadd.f32 %v1341, %v1342
      %v1344 = vsel %vm926, %v1289, 0.0
      %v1345 = vadd.f32 %v1343, %v1344
      %v1346 = vsel %vm926, %v1290, 0.0
      %v1347 = vadd.f32 %v1345, %v1346
      %v1348 = vsel %vm926, %v1291, 0.0
      %v1349 = vadd.f32 %v1347, %v1348
      %v1350 = vsel %vm926, %v1292, 0.0
      %v1351 = vadd.f32 %v1349, %v1350
      %v1352 = vsel %vm926, %v1293, 0.0
      %v1353 = vadd.f32 %v1351, %v1352
      %v1354 = vsel %vm926, %v1294, 0.0
      %v1355 = vadd.f32 %v1353, %v1354
      %v1356 = vsel %vm926, %v1295, 0.0
      %v1357 = vadd.f32 %v1355, %v1356
      %v1358 = vsel %vm926, %v1296, 0.0
      %v1359 = vadd.f32 %v1357, %v1358
      %v1360 = vrot.slane %v1359, 4
      %v1361 = vadd.f32 %v1359, %v1360
      %v1362 = vrot.slane %v1361, 2
      %v1363 = vadd.f32 %v1361, %v1362
      %v1364 = vrot.slane %v1363, 1
      %v1365 = vadd.f32 %v1363, %v1364
      %v1366 = vadd.f32 %v1365, 0.0
      %1367 = vrot.lane.b32.xlu0 %v759, 4
      %v1368 = vpop.permute.xlu0 %1367
      %1369 = vrot.lane.b32.xlu0 %v794, 8
      %v1370 = vpop.permute.xlu0 %1369
      %v1373 = vunpack.c.l.b16 %v271
      %v1374 = vunpack.c.l.b16 %v272
      %v1375 = vpack.c.b16 %v1374, %v1373
      %1376 = vrot.lane.b32.xlu0 %v1375, 12
      %v1377 = vpop.permute.xlu0 %1376
      %v1379 = vunpack.c.l.b16 %v273
      %v1380 = vpack.c.b16 %v1379, %v1379
      %v1382 = vshrl.u32 %v1375, 16
      %v1384 = vshll.u32 %v1375, 16
      %v1386 = vrot.slane %v1384, 1
      %v1387 = vor.u32 %v1382, %v1386
      %v1389 = vshll.u32 %v1380, 16
      %v1391 = vrot.slane %v1389, 1
      %v1392 = vsel %vm402, %v1387, %v1391
      %1393 = vrot.lane.b32.xlu0 %v1392, 16
      %v1394 = vpop.permute.xlu0 %1393
      %v1395 = vrot.slane %v1375, 1
      %v1396 = vrot.slane %v1380, 1
      %v1397 = vsel %vm627, %v1395, %v1396
      %1398 = vrot.lane.b32.xlu0 %v1397, 20
      %v1399 = vpop.permute.xlu0 %1398
      %v1401 = vsel %vm827, %v712, %v1368
      %v1403 = vsel %vm860, %v1401, %v1370
      %v1405 = vsel %vm893, %v1403, %v1377
      %v1407 = vsel %vm926, %v1405, %v1394
      %v1409 = vsel %vm959, %v1407, %v1399
      %s1410 = scalar_lea.vmem %s1, 12
      %v1411 = vld [vmem:[%s1410] sm:$0xf]
      %v1412 = vld [vmem:[%s1410 + $0x4] sm:$0xf]
      %v1413 = vld [vmem:[%s1410 + $0x8] sm:$0xf]
      %v1417 = vunpack.c.l.b16 %v1411
      %v1418 = vunpack.c.l.b16 %v1412
      %v1419 = vunpack.c.l.b16 %v1413
      %v1420 = vpack.c.b16 %v1418, %v1417
      %v1421 = vpack.c.b16 %v1419, %v1419
      %v1423 = vsel %vm1004, %v1409, 0
      %v1426 = vsel %vm1037, %v1421, 0
      %1428 = vmatpush.bf16.msra.mxu0 0
      %1429 = vmatpush.bf16.msra.mxu0 0
      %1430 = vmatpush.bf16.msra.mxu0 0
      %1431 = vmatpush.bf16.msra.mxu0 0
      %1432 = vmatpush.bf16.msra.mxu0 0
      %1433 = vmatpush.bf16.msra.mxu0 0
      %1434 = vmatpush.bf16.msra.mxu0 %v1426
      %1435 = vmatpush.bf16.msra.mxu0 %v1420
      %1436 = vmatmul.bf16.gmra.mxu0 %v1007
      %v1437 = vpop.f32.mrf.mxu0
      %v1438 = vadd.f32 0.0, %v1437
      %v1439 = vpop.f32.mrf.mxu0
      %v1440 = vadd.f32 0.0, %v1439
      %1441 = vmatmul.bf16.gmra.mxu0 %v1009
      %v1442 = vpop.f32.mrf.mxu0
      %v1443 = vadd.f32 0.0, %v1442
      %v1444 = vpop.f32.mrf.mxu0
      %v1445 = vadd.f32 0.0, %v1444
      %1446 = vmatmul.bf16.gmra.mxu0 %v1011
      %v1447 = vpop.f32.mrf.mxu0
      %v1448 = vadd.f32 0.0, %v1447
      %v1449 = vpop.f32.mrf.mxu0
      %v1450 = vadd.f32 0.0, %v1449
      %1451 = vmatmul.bf16.gmra.mxu0 %v1013
      %v1452 = vpop.f32.mrf.mxu0
      %v1453 = vadd.f32 0.0, %v1452
      %v1454 = vpop.f32.mrf.mxu0
      %v1455 = vadd.f32 0.0, %v1454
      %1456 = vmatmul.bf16.gmra.mxu0 %v1015
      %v1457 = vpop.f32.mrf.mxu0
      %v1458 = vadd.f32 0.0, %v1457
      %v1459 = vpop.f32.mrf.mxu0
      %v1460 = vadd.f32 0.0, %v1459
      %1461 = vmatmul.bf16.gmra.mxu0 %v1017
      %v1462 = vpop.f32.mrf.mxu0
      %v1463 = vadd.f32 0.0, %v1462
      %v1464 = vpop.f32.mrf.mxu0
      %v1465 = vadd.f32 0.0, %v1464
      %1466 = vmatmul.bf16.gmra.mxu0 %v1019
      %v1467 = vpop.f32.mrf.mxu0
      %v1468 = vadd.f32 0.0, %v1467
      %v1469 = vpop.f32.mrf.mxu0
      %v1470 = vadd.f32 0.0, %v1469
      %1471 = vmatmul.bf16.gmra.mxu0 %v1021
      %v1472 = vpop.f32.mrf.mxu0
      %v1473 = vadd.f32 0.0, %v1472
      %v1474 = vpop.f32.mrf.mxu0
      %v1475 = vadd.f32 0.0, %v1474
      %1476 = vmatmul.bf16.gmra.mxu0 %v1023
      %v1477 = vpop.f32.mrf.mxu0
      %v1478 = vadd.f32 0.0, %v1477
      %v1479 = vpop.f32.mrf.mxu0
      %v1480 = vadd.f32 0.0, %v1479
      %1481 = vmatmul.bf16.gmra.mxu0 %v1025
      %v1482 = vpop.f32.mrf.mxu0
      %v1483 = vadd.f32 0.0, %v1482
      %v1484 = vpop.f32.mrf.mxu0
      %v1485 = vadd.f32 0.0, %v1484
      %1486 = vmatmul.bf16.gmra.mxu0 %v1027
      %v1487 = vpop.f32.mrf.mxu0
      %v1488 = vadd.f32 0.0, %v1487
      %v1489 = vpop.f32.mrf.mxu0
      %v1490 = vadd.f32 0.0, %v1489
      %1491 = vmatmul.bf16.gmra.mxu0 %v1029
      %v1492 = vpop.f32.mrf.mxu0
      %v1493 = vadd.f32 0.0, %v1492
      %v1494 = vpop.f32.mrf.mxu0
      %v1495 = vadd.f32 0.0, %v1494
      %1496 = vmatmul.bf16.gmra.mxu0 %v1031
      %v1497 = vpop.f32.mrf.mxu0
      %v1498 = vadd.f32 0.0, %v1497
      %v1499 = vpop.f32.mrf.mxu0
      %v1500 = vadd.f32 0.0, %v1499
      %1501 = vmatmul.bf16.gmra.mxu0 %v1033
      %v1502 = vpop.f32.mrf.mxu0
      %v1503 = vadd.f32 0.0, %v1502
      %v1504 = vpop.f32.mrf.mxu0
      %v1505 = vadd.f32 0.0, %v1504
      %1506 = vmatmul.bf16.gmra.mxu0 %v1035
      %v1507 = vpop.f32.mrf.mxu0
      %v1508 = vadd.f32 0.0, %v1507
      %v1509 = vpop.f32.mrf.mxu0
      %v1510 = vadd.f32 0.0, %v1509
      %1511 = vmatmul.bf16.gmra.mxu0 %v1423
      %v1512 = vpop.f32.mrf.mxu0
      %v1513 = vadd.f32 0.0, %v1512
      %v1514 = vpop.f32.mrf.mxu0
      %v1515 = vadd.f32 0.0, %v1514
      %1516 = vdwg.mxu0
      %v1517 = vpack.c.bf16 %v1438, %v1438
      %v1518 = vpack.c.bf16 %v1440, %v1440
      %v1519 = vpack.c.bf16 %v1443, %v1443
      %v1520 = vpack.c.bf16 %v1445, %v1445
      %v1521 = vpack.c.bf16 %v1448, %v1448
      %v1522 = vpack.c.bf16 %v1450, %v1450
      %v1523 = vpack.c.bf16 %v1453, %v1453
      %v1524 = vpack.c.bf16 %v1455, %v1455
      %v1525 = vpack.c.bf16 %v1458, %v1458
      %v1526 = vpack.c.bf16 %v1460, %v1460
      %v1527 = vpack.c.bf16 %v1463, %v1463
      %v1528 = vpack.c.bf16 %v1465, %v1465
      %v1529 = vpack.c.bf16 %v1468, %v1468
      %v1530 = vpack.c.bf16 %v1470, %v1470
      %v1531 = vpack.c.bf16 %v1473, %v1473
      %v1532 = vpack.c.bf16 %v1475, %v1475
      %v1533 = vpack.c.bf16 %v1478, %v1478
      %v1534 = vpack.c.bf16 %v1480, %v1480
      %v1535 = vpack.c.bf16 %v1483, %v1483
      %v1536 = vpack.c.bf16 %v1485, %v1485
      %v1537 = vpack.c.bf16 %v1488, %v1488
      %v1538 = vpack.c.bf16 %v1490, %v1490
      %v1539 = vpack.c.bf16 %v1493, %v1493
      %v1540 = vpack.c.bf16 %v1495, %v1495
      %v1541 = vpack.c.bf16 %v1498, %v1498
      %v1542 = vpack.c.bf16 %v1500, %v1500
      %v1543 = vpack.c.bf16 %v1503, %v1503
      %v1544 = vpack.c.bf16 %v1505, %v1505
      %v1545 = vpack.c.bf16 %v1508, %v1508
      %v1546 = vpack.c.bf16 %v1510, %v1510
      %v1547 = vpack.c.bf16 %v1513, %v1513
      %v1548 = vpack.c.bf16 %v1515, %v1515
      %s1549 = scalar_lea.vmem %s206, 8
      %1550 = vst.msk [vmem:[%s1549] sm:$0xf] %vm1162, %v1517
      %1551 = vst.msk [vmem:[%s1549 + $0x4] sm:$0xf] %vm1162, %v1518
      %1552 = vst.msk [vmem:[%s1549 + $0x10] sm:$0xf] %vm1162, %v1519
      %1553 = vst.msk [vmem:[%s1549 + $0x14] sm:$0xf] %vm1162, %v1520
      %1554 = vst.msk [vmem:[%s1549 + $0x20] sm:$0xf] %vm1162, %v1521
      %1555 = vst.msk [vmem:[%s1549 + $0x24] sm:$0xf] %vm1162, %v1522
      %1556 = vst.msk [vmem:[%s1549 + $0x30] sm:$0xf] %vm1162, %v1523
      %1557 = vst.msk [vmem:[%s1549 + $0x34] sm:$0xf] %vm1162, %v1524
      %1558 = vst.msk [vmem:[%s1549 + $0x40] sm:$0xf] %vm1162, %v1525
      %1559 = vst.msk [vmem:[%s1549 + $0x44] sm:$0xf] %vm1162, %v1526
      %1560 = vst.msk [vmem:[%s1549 + $0x50] sm:$0xf] %vm1162, %v1527
      %1561 = vst.msk [vmem:[%s1549 + $0x54] sm:$0xf] %vm1162, %v1528
      %1562 = vst.msk [vmem:[%s1549 + $0x60] sm:$0xf] %vm1162, %v1529
      %1563 = vst.msk [vmem:[%s1549 + $0x64] sm:$0xf] %vm1162, %v1530
      %1564 = vst.msk [vmem:[%s1549 + $0x70] sm:$0xf] %vm1162, %v1531
      %1565 = vst.msk [vmem:[%s1549 + $0x74] sm:$0xf] %vm1162, %v1532
      %1566 = vst.msk [vmem:[%s1549 + $0x80] sm:$0xf] %vm1162, %v1533
      %1567 = vst.msk [vmem:[%s1549 + $0x84] sm:$0xf] %vm1162, %v1534
      %1568 = vst.msk [vmem:[%s1549 + $0x90] sm:$0xf] %vm1162, %v1535
      %1569 = vst.msk [vmem:[%s1549 + $0x94] sm:$0xf] %vm1162, %v1536
      %1570 = vst.msk [vmem:[%s1549 + $0xa0] sm:$0xf] %vm1162, %v1537
      %1571 = vst.msk [vmem:[%s1549 + $0xa4] sm:$0xf] %vm1162, %v1538
      %1572 = vst.msk [vmem:[%s1549 + $0xb0] sm:$0xf] %vm1162, %v1539
      %1573 = vst.msk [vmem:[%s1549 + $0xb4] sm:$0xf] %vm1162, %v1540
      %1574 = vst.msk [vmem:[%s1549 + $0xc0] sm:$0xf] %vm1162, %v1541
      %1575 = vst.msk [vmem:[%s1549 + $0xc4] sm:$0xf] %vm1162, %v1542
      %1576 = vst.msk [vmem:[%s1549 + $0xd0] sm:$0xf] %vm1162, %v1543
      %1577 = vst.msk [vmem:[%s1549 + $0xd4] sm:$0xf] %vm1162, %v1544
      %1578 = vst.msk [vmem:[%s1549 + $0xe0] sm:$0xf] %vm1162, %v1545
      %1579 = vst.msk [vmem:[%s1549 + $0xe4] sm:$0xf] %vm1162, %v1546
      %1580 = vst.msk [vmem:[%s1549 + $0xf0] sm:$0xf] %vm1162, %v1547
      %1581 = vst.msk [vmem:[%s1549 + $0xf4] sm:$0xf] %vm1162, %v1548
      %v1582 = vsel %vm926, %v1438, 0.0
      %v1583 = vsel %vm926, %v1440, 0.0
      %v1584 = vadd.f32 %v1582, %v1583
      %v1585 = vsel %vm926, %v1443, 0.0
      %v1586 = vadd.f32 %v1584, %v1585
      %v1587 = vsel %vm926, %v1445, 0.0
      %v1588 = vadd.f32 %v1586, %v1587
      %v1589 = vsel %vm926, %v1448, 0.0
      %v1590 = vadd.f32 %v1588, %v1589
      %v1591 = vsel %vm926, %v1450, 0.0
      %v1592 = vadd.f32 %v1590, %v1591
      %v1593 = vsel %vm926, %v1453, 0.0
      %v1594 = vadd.f32 %v1592, %v1593
      %v1595 = vsel %vm926, %v1455, 0.0
      %v1596 = vadd.f32 %v1594, %v1595
      %v1597 = vsel %vm926, %v1458, 0.0
      %v1598 = vadd.f32 %v1596, %v1597
      %v1599 = vsel %vm926, %v1460, 0.0
      %v1600 = vadd.f32 %v1598, %v1599
      %v1601 = vsel %vm926, %v1463, 0.0
      %v1602 = vadd.f32 %v1600, %v1601
      %v1603 = vsel %vm926, %v1465, 0.0
      %v1604 = vadd.f32 %v1602, %v1603
      %v1605 = vsel %vm926, %v1468, 0.0
      %v1606 = vadd.f32 %v1604, %v1605
      %v1607 = vsel %vm926, %v1470, 0.0
      %v1608 = vadd.f32 %v1606, %v1607
      %v1609 = vsel %vm926, %v1473, 0.0
      %v1610 = vadd.f32 %v1608, %v1609
      %v1611 = vsel %vm926, %v1475, 0.0
      %v1612 = vadd.f32 %v1610, %v1611
      %v1613 = vsel %vm926, %v1478, 0.0
      %v1614 = vadd.f32 %v1612, %v1613
      %v1615 = vsel %vm926, %v1480, 0.0
      %v1616 = vadd.f32 %v1614, %v1615
      %v1617 = vsel %vm926, %v1483, 0.0
      %v1618 = vadd.f32 %v1616, %v1617
      %v1619 = vsel %vm926, %v1485, 0.0
      %v1620 = vadd.f32 %v1618, %v1619
      %v1621 = vsel %vm926, %v1488, 0.0
      %v1622 = vadd.f32 %v1620, %v1621
      %v1623 = vsel %vm926, %v1490, 0.0
      %v1624 = vadd.f32 %v1622, %v1623
      %v1625 = vsel %vm926, %v1493, 0.0
      %v1626 = vadd.f32 %v1624, %v1625
      %v1627 = vsel %vm926, %v1495, 0.0
      %v1628 = vadd.f32 %v1626, %v1627
      %v1629 = vsel %vm926, %v1498, 0.0
      %v1630 = vadd.f32 %v1628, %v1629
      %v1631 = vsel %vm926, %v1500, 0.0
      %v1632 = vadd.f32 %v1630, %v1631
      %v1633 = vsel %vm926, %v1503, 0.0
      %v1634 = vadd.f32 %v1632, %v1633
      %v1635 = vsel %vm926, %v1505, 0.0
      %v1636 = vadd.f32 %v1634, %v1635
      %v1637 = vsel %vm926, %v1508, 0.0
      %v1638 = vadd.f32 %v1636, %v1637
      %v1639 = vsel %vm926, %v1510, 0.0
      %v1640 = vadd.f32 %v1638, %v1639
      %v1641 = vsel %vm926, %v1513, 0.0
      %v1642 = vadd.f32 %v1640, %v1641
      %v1643 = vsel %vm926, %v1515, 0.0
      %v1644 = vadd.f32 %v1642, %v1643
      %v1645 = vrot.slane %v1644, 4
      %v1646 = vadd.f32 %v1644, %v1645
      %v1647 = vrot.slane %v1646, 2
      %v1648 = vadd.f32 %v1646, %v1647
      %v1649 = vrot.slane %v1648, 1
      %v1650 = vadd.f32 %v1648, %v1649
      %v1651 = vadd.f32 %v1264, %v1650
      %v1652 = vmul.f32 %v1438, %v1438
      %v1653 = vmul.f32 %v1440, %v1440
      %v1654 = vmul.f32 %v1443, %v1443
      %v1655 = vmul.f32 %v1445, %v1445
      %v1656 = vmul.f32 %v1448, %v1448
      %v1657 = vmul.f32 %v1450, %v1450
      %v1658 = vmul.f32 %v1453, %v1453
      %v1659 = vmul.f32 %v1455, %v1455
      %v1660 = vmul.f32 %v1458, %v1458
      %v1661 = vmul.f32 %v1460, %v1460
      %v1662 = vmul.f32 %v1463, %v1463
      %v1663 = vmul.f32 %v1465, %v1465
      %v1664 = vmul.f32 %v1468, %v1468
      %v1665 = vmul.f32 %v1470, %v1470
      %v1666 = vmul.f32 %v1473, %v1473
      %v1667 = vmul.f32 %v1475, %v1475
      %v1668 = vmul.f32 %v1478, %v1478
      %v1669 = vmul.f32 %v1480, %v1480
      %v1670 = vmul.f32 %v1483, %v1483
      %v1671 = vmul.f32 %v1485, %v1485
      %v1672 = vmul.f32 %v1488, %v1488
      %v1673 = vmul.f32 %v1490, %v1490
      %v1674 = vmul.f32 %v1493, %v1493
      %v1675 = vmul.f32 %v1495, %v1495
      %v1676 = vmul.f32 %v1498, %v1498
      %v1677 = vmul.f32 %v1500, %v1500
      %v1678 = vmul.f32 %v1503, %v1503
      %v1679 = vmul.f32 %v1505, %v1505
      %v1680 = vmul.f32 %v1508, %v1508
      %v1681 = vmul.f32 %v1510, %v1510
      %v1682 = vmul.f32 %v1513, %v1513
      %v1683 = vmul.f32 %v1515, %v1515
      %v1684 = vsel %vm926, %v1652, 0.0
      %v1685 = vsel %vm926, %v1653, 0.0
      %v1686 = vadd.f32 %v1684, %v1685
      %v1687 = vsel %vm926, %v1654, 0.0
      %v1688 = vadd.f32 %v1686, %v1687
      %v1689 = vsel %vm926, %v1655, 0.0
      %v1690 = vadd.f32 %v1688, %v1689
      %v1691 = vsel %vm926, %v1656, 0.0
      %v1692 = vadd.f32 %v1690, %v1691
      %v1693 = vsel %vm926, %v1657, 0.0
      %v1694 = vadd.f32 %v1692, %v1693
      %v1695 = vsel %vm926, %v1658, 0.0
      %v1696 = vadd.f32 %v1694, %v1695
      %v1697 = vsel %vm926, %v1659, 0.0
      %v1698 = vadd.f32 %v1696, %v1697
      %v1699 = vsel %vm926, %v1660, 0.0
      %v1700 = vadd.f32 %v1698, %v1699
      %v1701 = vsel %vm926, %v1661, 0.0
      %v1702 = vadd.f32 %v1700, %v1701
      %v1703 = vsel %vm926, %v1662, 0.0
      %v1704 = vadd.f32 %v1702, %v1703
      %v1705 = vsel %vm926, %v1663, 0.0
      %v1706 = vadd.f32 %v1704, %v1705
      %v1707 = vsel %vm926, %v1664, 0.0
      %v1708 = vadd.f32 %v1706, %v1707
      %v1709 = vsel %vm926, %v1665, 0.0
      %v1710 = vadd.f32 %v1708, %v1709
      %v1711 = vsel %vm926, %v1666, 0.0
      %v1712 = vadd.f32 %v1710, %v1711
      %v1713 = vsel %vm926, %v1667, 0.0
      %v1714 = vadd.f32 %v1712, %v1713
      %v1715 = vsel %vm926, %v1668, 0.0
      %v1716 = vadd.f32 %v1714, %v1715
      %v1717 = vsel %vm926, %v1669, 0.0
      %v1718 = vadd.f32 %v1716, %v1717
      %v1719 = vsel %vm926, %v1670, 0.0
      %v1720 = vadd.f32 %v1718, %v1719
      %v1721 = vsel %vm926, %v1671, 0.0
      %v1722 = vadd.f32 %v1720, %v1721
      %v1723 = vsel %vm926, %v1672, 0.0
      %v1724 = vadd.f32 %v1722, %v1723
      %v1725 = vsel %vm926, %v1673, 0.0
      %v1726 = vadd.f32 %v1724, %v1725
      %v1727 = vsel %vm926, %v1674, 0.0
      %v1728 = vadd.f32 %v1726, %v1727
      %v1729 = vsel %vm926, %v1675, 0.0
      %v1730 = vadd.f32 %v1728, %v1729
      %v1731 = vsel %vm926, %v1676, 0.0
      %v1732 = vadd.f32 %v1730, %v1731
      %v1733 = vsel %vm926, %v1677, 0.0
      %v1734 = vadd.f32 %v1732, %v1733
      %v1735 = vsel %vm926, %v1678, 0.0
      %v1736 = vadd.f32 %v1734, %v1735
      %v1737 = vsel %vm926, %v1679, 0.0
      %v1738 = vadd.f32 %v1736, %v1737
      %v1739 = vsel %vm926, %v1680, 0.0
      %v1740 = vadd.f32 %v1738, %v1739
      %v1741 = vsel %vm926, %v1681, 0.0
      %v1742 = vadd.f32 %v1740, %v1741
      %v1743 = vsel %vm926, %v1682, 0.0
      %v1744 = vadd.f32 %v1742, %v1743
      %v1745 = vsel %vm926, %v1683, 0.0
      %v1746 = vadd.f32 %v1744, %v1745
      %v1747 = vrot.slane %v1746, 4
      %v1748 = vadd.f32 %v1746, %v1747
      %v1749 = vrot.slane %v1748, 2
      %v1750 = vadd.f32 %v1748, %v1749
      %v1751 = vrot.slane %v1750, 1
      %v1752 = vadd.f32 %v1750, %v1751
      %v1753 = vadd.f32 %v1366, %v1752
      %vm1754 = vcmask 122880
      %1755 = vst.msk [vmem:[%s214] sm:$0x1] %vm1754, %v1651
      %1756 = vst.msk [vmem:[%s214 + $0x1] sm:$0x1] %vm1754, %v1753
      %s1757 = smul.u32 16, %s20
      %p1758 = scmp.lt.s32.totalorder %s19, 1
      %s1759 = scalar_select %p1758, %s19, 1
      %p1760 = scmp.lt.s32.totalorder %s1757, 15
      %s1761 = scalar_select %p1760, %s1757, 15
      %s1762 = smul.addr %s1761, 4
      %s1763 = smul.addr %s1759, 64
      %s1764 = sadd.s32 %s1762, %s1763
      %s1765 = smul.addr %s1764, 4
      %s1766 = scalar_lea.vmem %s2, %s1765
      %p1767 = scmp.lt.s32.totalorder %s19, 1
      %s1768 = scalar_select %p1767, %s19, 1
      %p1769 = scmp.lt.s32.totalorder %s20, 0
      %s1770 = scalar_select %p1769, %s20, 0
      %s1771 = sadd.s32 %s1770, %s1768
      %s1772 = smul.addr %s1771, 2
      %s1773 = scalar_lea.vmem %s3, %s1772
      // Predicated region
      $region29: #{build_deconv_forward.1} parent=27 // pred_check
        %p1774 = pneg %p94
      $region30: #{build_deconv_forward.1} parent=27 // pred_check_branch
        %1776 = sbr.rel (%p1774) target = $region32
      $region31: #{build_deconv_forward.1} parent=27 // pred_region
        %s1777 = smul.u32 16, %s20
      $region32: #{build_deconv_forward.1} parent=27 // pred_fallthru
        _
      // Predicated region
      $region33: #{build_deconv_forward.1} parent=27 // pred_check
        %p1778 = pneg %p122
      $region34: #{build_deconv_forward.1} parent=27 // pred_check_branch
        %1780 = sbr.rel (%p1778) target = $region36
      $region35: #{build_deconv_forward.1} parent=27 // pred_region
        _
      $region36: #{build_deconv_forward.1} parent=27 // pred_fallthru
        _
    $region28: #{build_deconv_forward.1} parent=5 // pred_fallthru
      _
    %p1781 = scmp.le.s32.totalorder 2, %s10
    // Predicated region
    $region37: #{build_deconv_forward.1} parent=5 // pred_check
      %p1782 = pneg %p1781
    $region38: #{build_deconv_forward.1} parent=5 // pred_check_branch
      %1784 = sbr.rel (%p1782) target = $region40
    $region39: #{build_deconv_forward.1} parent=5 // pred_region
      %s1785 = ssub.s32 %s10, 2
      // Predicated region
      $region41: #{build_deconv_forward.1} parent=39 // pred_check
        %p1786 = pneg %p100
      $region42: #{build_deconv_forward.1} parent=39 // pred_check_branch
        %1788 = sbr.rel (%p1786) target = $region44
      $region43: #{build_deconv_forward.1} parent=39 // pred_region
        %s1789 = smul.u32 16, %s22
        %p1790 = scmp.lt.s32.totalorder %s21, 1
        %s1791 = scalar_select %p1790, %s21, 1
        %p1792 = scmp.lt.s32.totalorder %s1789, 15
        %s1793 = scalar_select %p1792, %s1789, 15
        %s1794 = smul.addr %s1793, 4
        %s1795 = smul.addr %s1791, 64
        %s1796 = sadd.s32 %s1794, %s1795
        %s1797 = smul.addr %s1796, 4
        %s1798 = scalar_lea.vmem %s2, %s1797
      $region44: #{build_deconv_forward.1} parent=39 // pred_fallthru
        _
      // Predicated region
      $region45: #{build_deconv_forward.1} parent=39 // pred_check
        %p1799 = pneg %p128
      $region46: #{build_deconv_forward.1} parent=39 // pred_check_branch
        %1801 = sbr.rel (%p1799) target = $region48
      $region47: #{build_deconv_forward.1} parent=39 // pred_region
        %p1802 = scmp.lt.s32.totalorder %s21, 1
        %s1803 = scalar_select %p1802, %s21, 1
        %p1804 = scmp.lt.s32.totalorder %s22, 0
        %s1805 = scalar_select %p1804, %s22, 0
        %s1806 = sadd.s32 %s1805, %s1803
        %s1807 = smul.addr %s1806, 2
        %s1808 = scalar_lea.vmem %s3, %s1807
      $region48: #{build_deconv_forward.1} parent=39 // pred_fallthru
        _
    $region40: #{build_deconv_forward.1} parent=5 // pred_fallthru
      _
  $region6: #{build_deconv_forward.1} parent=0 // loop_footer
    %s14 = sadd.s32 1, %s10
  $region7: #{build_deconv_forward.1} parent=0 // loop_footer_branch
    %9 = sbr.rel target = $region3
  $region8: #{build_deconv_forward.1} parent=0 // loop_exit
    _

</llo_original>
